<compile_context>
chip_gen: v5e
topology: v5e:2x2
jax: 0.10.0
libtpu: 0.0.40
codegen_flags: <defaults>
</compile_context>

<pallas_src>
import jax
import jax.numpy as jnp
from jax import lax
from jax.experimental import pallas as pl
from jax.experimental.pallas import tpu as pltpu


# ----------------------------------------------------------------------------
# Kernel
# ----------------------------------------------------------------------------
def _make_bottleneck_kernel(conv2_groups):
    assert conv2_groups in (1, 3, 9)
    per_group = 9 // conv2_groups

    def kernel(x_ref, w1_ref, b1_ref, w2_ref, b2_ref, w3_ref, b3_ref, out_ref):
        # x_ref : (1, H, W, Cin)   f32 or bf16
        # w1_ref: (Cin, width)     bf16  (BN1 scale folded in)
        # w2_ref: (9*width, width) bf16  (3x3 taps flattened kh-major, BN2 folded)
        # w3_ref: (width, Cout)    bf16  (BN3 scale folded in)
        # b*_ref: (1, C) f32       out_ref: (1, H, W, Cout), dtype == x dtype
        _, H, W, Cin = x_ref.shape
        width = w1_ref.shape[1]
        Cout = w3_ref.shape[1]
        HW = H * W

        # ---- conv1 (1x1) + bn1 (scale pre-folded -> bias only) + relu -------
        # Residual read is deferred to the end: no long-lived f32 copy of x.
        xb = x_ref[0].reshape(HW, Cin).astype(jnp.bfloat16)
        y1 = jnp.dot(xb, w1_ref[...], preferred_element_type=jnp.float32)
        # Cast to bf16 immediately so the nine shifted taps are built in bf16.
        y1 = jnp.maximum(y1 + b1_ref[...], 0.0).astype(jnp.bfloat16)  # (HW, width)

        # ---- conv2 (3x3, stride 1, pad 1) via register-level shifted taps ---
        # Zero rows/columns supply the padding: no padded VMEM scratch, no
        # memset, no masked scratch stores.
        y1_3d = y1.reshape(H, W, width)
        zrow = jnp.zeros((1, W, width), jnp.bfloat16)
        zcol = jnp.zeros((H, 1, width), jnp.bfloat16)
        wsh = {  # dw-shifted copies (bf16)
            -1: jnp.concatenate([zcol, y1_3d[:, :W - 1, :]], axis=1),
            0: y1_3d,
            1: jnp.concatenate([y1_3d[:, 1:, :], zcol], axis=1),
        }

        def tap(dh, dw):  # tap[h, w, :] = y1[h+dh, w+dw, :]  (zero outside)
            a = wsh[dw]
            if dh == -1:
                t = jnp.concatenate([zrow, a[:H - 1]], axis=0)
            elif dh == 1:
                t = jnp.concatenate([a[1:], zrow], axis=0)
            else:
                t = a
            return t.reshape(HW, width)

        taps_order = [(dh, dw) for dh in (-1, 0, 1) for dw in (-1, 0, 1)]
        w2_full = w2_ref[...]                          # (9*width, width) bf16
        kg = per_group * width
        y2 = None                                      # f32 accumulator
        for g in range(conv2_groups):
            group = taps_order[g * per_group:(g + 1) * per_group]
            if per_group == 1:
                slab = tap(*group[0])
            else:
                slab = jnp.concatenate([tap(dh, dw) for dh, dw in group],
                                       axis=-1)        # (HW, per_group*width) bf16
            wg = w2_full if conv2_groups == 1 else w2_full[g * kg:(g + 1) * kg]
            part = jnp.dot(slab, wg, preferred_element_type=jnp.float32)
            y2 = part if y2 is None else y2 + part
        y2 = jnp.maximum(y2 + b2_ref[...], 0.0).astype(jnp.bfloat16)

        # ---- conv3 (1x1) + bn3 ----------------------------------------------
        y3 = jnp.dot(y2, w3_ref[...], preferred_element_type=jnp.float32)
        y3 = y3 + b3_ref[...]

        # ---- residual add (identity, re-read fresh from VMEM) + relu --------
        x_res = x_ref[0].reshape(HW, Cin).astype(jnp.float32)
        out = jnp.maximum(y3 + x_res, 0.0)
        out_ref[0] = out.reshape(H, W, Cout).astype(out_ref.dtype)

    return kernel


# ----------------------------------------------------------------------------
# Per-generation configuration helpers
# ----------------------------------------------------------------------------
def _tpu_vmem_capacity_bytes(default=128 * 1024 * 1024):
    try:
        return int(pltpu.get_tpu_info().vmem_capacity_bytes)
    except Exception:
        return default  # assume v5e/v6e-class if the query is unavailable


def _pick_conv2_groups(width):
    # v7x-class (64 MiB VMEM, MRB in-place accumulation): per-tap matmuls.
    if _tpu_vmem_capacity_bytes() <= 64 * 1024 * 1024:
        return 9
    # v5e/v6e: big-K slab when tap boundaries land on lane tiles, otherwise
    # per-dh groups to reduce mid-vreg concat boundaries.
    return 1 if width % 128 == 0 else 3


def _vmem_limit_bytes(H, W, Cin, width, Cout, in_itemsize, out_itemsize,
                      conv2_groups):
    hw = H * W
    per_group = 9 // conv2_groups
    io = 2 * hw * (Cin * in_itemsize + Cout * out_itemsize)     # dbl-buffered blocks
    temps = hw * (2 * width                                     # y1 (bf16)
                  + 2 * 2 * per_group * width                   # slab + staging (bf16)
                  + 4 * width                                   # y2 accumulator (f32)
                  + 4 * Cout                                    # y3 (f32)
                  + 4 * Cin                                     # residual (f32)
                  + 4 * Cout)                                   # out (f32)
    weights = (2 * 2 * (Cin * width + 9 * width * width + width * Cout)
               + 4 * (2 * width + Cout))
    need = int(1.5 * (io + temps + weights)) + (4 << 20)
    cap = (_tpu_vmem_capacity_bytes() * 3) // 4
    return max(16 << 20, min(need, cap))


# ----------------------------------------------------------------------------
# Parameter folding and wrappers
# ----------------------------------------------------------------------------
def fold_params(params):
    """Fold eval-mode BN scales into the conv weights; cast MXU weights to bf16."""
    (w1, s1, b1, w2, s2, b2, w3, s3, b3) = params
    width = w1.shape[1]
    w1f = (w1 * s1).astype(jnp.bfloat16)                            # (Cin, width)
    w2f = (w2 * s2).reshape(9 * width, width).astype(jnp.bfloat16)  # (9*width, width)
    w3f = (w3 * s3).astype(jnp.bfloat16)                            # (width, Cout)
    return (w1f, b1.astype(jnp.float32), w2f, b2.astype(jnp.float32),
            w3f, b3.astype(jnp.float32))


def bottleneck_forward_nhwc(x_nhwc, folded, *, conv2_groups=None):
    """x_nhwc: (N, H, W, Cin) f32 or bf16 (channels-last).

    Returns (N, H, W, Cout) in x's dtype (bf16 boundary halves HBM I/O)."""
    (w1, b1, w2, b2, w3, b3) = folded
    N, H, W, Cin = x_nhwc.shape
    width = w1.shape[1]
    Cout = w3.shape[1]
    assert Cin == Cout, "identity residual requires inplanes == planes*4"

    if conv2_groups is None:
        conv2_groups = _pick_conv2_groups(width)
    assert conv2_groups in (1, 3, 9)

    out_dtype = x_nhwc.dtype
    in_isz = jnp.dtype(x_nhwc.dtype).itemsize
    out_isz = jnp.dtype(out_dtype).itemsize

    def full(a):
        rank = a.ndim
        return pl.BlockSpec(a.shape, lambda n: (0,) * rank)

    flops = 2 * N * H * W * (Cin * width + 9 * width * width + width * Cout)
    bytes_accessed = (N * H * W * Cin * in_isz + N * H * W * Cout * out_isz
                      + (w1.size + w2.size + w3.size) * 2
                      + (b1.size + b2.size + b3.size) * 4)

    return pl.pallas_call(
        _make_bottleneck_kernel(conv2_groups),
        out_shape=jax.ShapeDtypeStruct((N, H, W, Cout), out_dtype),
        grid_spec=pltpu.PrefetchScalarGridSpec(
            num_scalar_prefetch=0,
            grid=(N,),
            in_specs=[
                pl.BlockSpec((1, H, W, Cin), lambda n: (n, 0, 0, 0)),
                full(w1), full(b1), full(w2), full(b2), full(w3), full(b3),
            ],
            out_specs=pl.BlockSpec((1, H, W, Cout), lambda n: (n, 0, 0, 0)),
        ),
        compiler_params=pltpu.CompilerParams(
            dimension_semantics=("parallel",),
            vmem_limit_bytes=_vmem_limit_bytes(H, W, Cin, width, Cout,
                                               in_isz, out_isz, conv2_groups)),
        cost_estimate=pl.CostEstimate(
            flops=flops, transcendentals=0, bytes_accessed=bytes_accessed),
    )(x_nhwc, w1, b1, w2, b2, w3, b3)


def bottleneck_forward(x_nchw, folded, *, conv2_groups=None):
    """PyTorch-layout (NCHW) compatibility wrapper.

    Prefer `bottleneck_forward_nhwc`: these transposes are extra full HBM
    passes on a bandwidth-bound op."""
    x = jnp.transpose(x_nchw, (0, 2, 3, 1))
    y = bottleneck_forward_nhwc(x, folded, conv2_groups=conv2_groups)
    return jnp.transpose(y, (0, 3, 1, 2))


# ----------------------------------------------------------------------------
# Synthetic parameters and plain-JAX reference
# ----------------------------------------------------------------------------
def make_params(key, inplanes, planes, base_width=64, groups=1, eps=1e-5):
    """Deterministic synthetic parameters (matches module __init__ shapes)."""
    width = int(planes * (base_width / 64.0)) * groups
    cout = planes * 4  # expansion = 4
    ks = jax.random.split(key, 12)

    def bn(kg, kb, km, kv, c):
        gamma = jax.random.normal(kg, (1, c), jnp.float32) * 0.1 + 1.0
        beta = jax.random.normal(kb, (1, c), jnp.float32) * 0.1
        mean = jax.random.normal(km, (1, c), jnp.float32) * 0.1
        var = jax.random.uniform(kv, (1, c), jnp.float32, 0.5, 1.5)
        scale = gamma / jnp.sqrt(var + eps)
        bias = beta - mean * scale
        return scale, bias

    # conv weights stored as (Cin, Cout) / (kh, kw, Cin, Cout) [HWIO]
    w1 = jax.random.normal(ks[0], (inplanes, width), jnp.float32) * 0.1
    w2 = jax.random.normal(ks[1], (3, 3, width, width), jnp.float32) * 0.1
    w3 = jax.random.normal(ks[2], (width, cout), jnp.float32) * 0.1
    s1, b1 = bn(ks[3], ks[4], ks[5], ks[6], width)
    s2, b2 = bn(ks[7], ks[8], ks[9], ks[10], width)
    s3, b3 = bn(ks[11], ks[3], ks[7], ks[0], cout)  # reuse keys (deterministic)
    return (w1, s1, b1, w2, s2, b2, w3, s3, b3)


def reference_forward_nhwc(x, params):
    """Plain-JAX reference (eval-mode BN, f32) in NHWC for correctness checks."""
    (w1, s1, b1, w2, s2, b2, w3, s3, b3) = params
    y = jnp.einsum('nhwc,cd->nhwd', x, w1)
    y = jnp.maximum(y * s1[0] + b1[0], 0.0)
    y = lax.conv_general_dilated(
        y, w2, window_strides=(1, 1), padding=((1, 1), (1, 1)),
        dimension_numbers=('NHWC', 'HWIO', 'NHWC'))
    y = jnp.maximum(y * s2[0] + b2[0], 0.0)
    y = jnp.einsum('nhwc,cd->nhwd', y, w3)
    y = y * s3[0] + b3[0]
    return jnp.maximum(y + x, 0.0)


# ----------------------------------------------------------------------------
# Smoke test
# ----------------------------------------------------------------------------
if __name__ == "__main__":
    key = jax.random.PRNGKey(0)
    k_x, k_p = jax.random.split(key)

    # Small Bottleneck: inplanes=16, planes=4 -> width=4, out_channels=16
    N, inplanes, planes, H, W = 2, 16, 4, 16, 16
    x_nchw = jax.random.normal(k_x, (N, inplanes, H, W), jnp.float32)
    params = make_params(k_p, inplanes, planes)
    folded = fold_params(params)

    # The kernel works natively in NHWC; transpose once at the data boundary.
    x_nhwc = jnp.transpose(x_nchw, (0, 2, 3, 1))
    ref = reference_forward_nhwc(x_nhwc, params)

    # All three conv2 MXU-driving modes (1: v5e/v6e big-K slab, 3: per-dh
    # groups, 9: per-tap accumulation for v7x) must agree with the reference.
    for groups in (1, 3, 9):
        out = bottleneck_forward_nhwc(x_nhwc, folded, conv2_groups=groups)
        out = jax.block_until_ready(out)
        assert out.shape == (N, H, W, planes * 4)
        err = jnp.max(jnp.abs(out - ref))
        # bf16 MXU inputs vs f32 reference -> slightly relaxed tolerance.
        assert jnp.allclose(out, ref, rtol=2e-2, atol=2e-2), (
            f"conv2_groups={groups}: max abs err = {err}")

    # Auto-selected mode (per-generation default).
    out = jax.block_until_ready(bottleneck_forward_nhwc(x_nhwc, folded))
    assert jnp.allclose(out, ref, rtol=2e-2, atol=2e-2)

    # bf16 activation boundary (halves HBM I/O on this bandwidth-bound op).
    out_bf16 = bottleneck_forward_nhwc(x_nhwc.astype(jnp.bfloat16), folded)
    out_bf16 = jax.block_until_ready(out_bf16)
    assert out_bf16.dtype == jnp.bfloat16
    assert jnp.allclose(out_bf16.astype(jnp.float32), ref, rtol=1e-1, atol=1e-1)

    # NCHW (PyTorch-layout) compatibility wrapper.
    out_nchw = jax.block_until_ready(bottleneck_forward(x_nchw, folded))
    assert jnp.allclose(out_nchw, jnp.transpose(ref, (0, 3, 1, 2)),
                        rtol=2e-2, atol=2e-2)

    print("KERNEL_OK")
</pallas_src>

<mosaic_0001>
module attributes {stable_mosaic.version = 11 : i64} {
  func.func @kernel(%arg0: i32, %arg1: memref<1x16x16x16xf32, #tpu.memory_space<vmem>>, %arg2: memref<16x4xbf16, #tpu.memory_space<vmem>>, %arg3: memref<1x4xf32, #tpu.memory_space<vmem>>, %arg4: memref<36x4xbf16, #tpu.memory_space<vmem>>, %arg5: memref<1x4xf32, #tpu.memory_space<vmem>>, %arg6: memref<4x16xbf16, #tpu.memory_space<vmem>>, %arg7: memref<1x16xf32, #tpu.memory_space<vmem>>, %arg8: memref<1x16x16x16xf32, #tpu.memory_space<vmem>>) attributes {dimension_semantics = [#tpu.dimension_semantics<parallel>], iteration_bounds = array<i64: 2>, scalar_prefetch = 0 : i64, scratch_operands = 0 : i64, tpu.core_type = #tpu.core_type<tc>, window_params = [{transform_indices = @transform_0, window_bounds = array<i64: 1, 16, 16, 16>}, {pipeline_mode = #tpu.pipeline_mode<synchronous>, transform_indices = @transform_1, window_bounds = array<i64: 16, 4>}, {pipeline_mode = #tpu.pipeline_mode<synchronous>, transform_indices = @transform_2, window_bounds = array<i64: 1, 4>}, {pipeline_mode = #tpu.pipeline_mode<synchronous>, transform_indices = @transform_3, window_bounds = array<i64: 36, 4>}, {pipeline_mode = #tpu.pipeline_mode<synchronous>, transform_indices = @transform_4, window_bounds = array<i64: 1, 4>}, {pipeline_mode = #tpu.pipeline_mode<synchronous>, transform_indices = @transform_5, window_bounds = array<i64: 4, 16>}, {pipeline_mode = #tpu.pipeline_mode<synchronous>, transform_indices = @transform_6, window_bounds = array<i64: 1, 16>}, {transform_indices = @transform_7, window_bounds = array<i64: 1, 16, 16, 16>}]} {
    %c0 = arith.constant 0 : index
    %c0_0 = arith.constant 0 : index
    %c0_1 = arith.constant 0 : index
    %c0_2 = arith.constant 0 : index
    %0 = vector.load %arg1[%c0, %c0_0, %c0_1, %c0_2] : memref<1x16x16x16xf32, #tpu.memory_space<vmem>>, vector<1x16x16x16xf32>
    %1 = vector.shape_cast %0 : vector<1x16x16x16xf32> to vector<16x16x16xf32>
    %2 = vector.shape_cast %1 : vector<16x16x16xf32> to vector<256x16xf32>
    %3 = arith.truncf %2 : vector<256x16xf32> to vector<256x16xbf16>
    %c0_3 = arith.constant 0 : index
    %c0_4 = arith.constant 0 : index
    %4 = vector.load %arg2[%c0_3, %c0_4] : memref<16x4xbf16, #tpu.memory_space<vmem>>, vector<16x4xbf16>
    %cst = arith.constant dense<0.000000e+00> : vector<256x4xf32>
    %5 = tpu.matmul %3, %4, %cst {dimension_numbers = #tpu.dot_dimension_numbers<[1], [0], [0], [1], [0, 0, 1, 1], [], []>} : vector<256x16xbf16>, vector<16x4xbf16>, vector<256x4xf32> -> vector<256x4xf32>
    %c0_5 = arith.constant 0 : index
    %c0_6 = arith.constant 0 : index
    %6 = vector.load %arg3[%c0_5, %c0_6] : memref<1x4xf32, #tpu.memory_space<vmem>>, vector<1x4xf32>
    %7 = vector.broadcast %6 : vector<1x4xf32> to vector<256x4xf32>
    %8 = arith.addf %5, %7 : vector<256x4xf32>
    %cst_7 = arith.constant 0.000000e+00 : f32
    %9 = vector.broadcast %cst_7 : f32 to vector<256x4xf32>
    %10 = arith.maximumf %8, %9 : vector<256x4xf32>
    %11 = arith.truncf %10 : vector<256x4xf32> to vector<256x4xbf16>
    %12 = vector.shape_cast %11 : vector<256x4xbf16> to vector<16x16x4xbf16>
    %cst_8 = arith.constant 0.000000e+00 : bf16
    %13 = vector.broadcast %cst_8 : bf16 to vector<1x16x4xbf16>
    %cst_9 = arith.constant 0.000000e+00 : bf16
    %14 = vector.broadcast %cst_9 : bf16 to vector<16x1x4xbf16>
    %15 = vector.extract_strided_slice %12 {offsets = [0, 0, 0], sizes = [16, 15, 4], strides = [1, 1, 1]} : vector<16x16x4xbf16> to vector<16x15x4xbf16>
    %16 = tpu.concatenate %14, %15 in 1 : vector<16x1x4xbf16>, vector<16x15x4xbf16> -> vector<16x16x4xbf16>
    %17 = vector.extract_strided_slice %12 {offsets = [0, 1, 0], sizes = [16, 15, 4], strides = [1, 1, 1]} : vector<16x16x4xbf16> to vector<16x15x4xbf16>
    %18 = tpu.concatenate %17, %14 in 1 : vector<16x15x4xbf16>, vector<16x1x4xbf16> -> vector<16x16x4xbf16>
    %c0_10 = arith.constant 0 : index
    %c0_11 = arith.constant 0 : index
    %19 = vector.load %arg4[%c0_10, %c0_11] : memref<36x4xbf16, #tpu.memory_space<vmem>>, vector<36x4xbf16>
    %20 = vector.extract_strided_slice %16 {offsets = [0, 0, 0], sizes = [15, 16, 4], strides = [1, 1, 1]} : vector<16x16x4xbf16> to vector<15x16x4xbf16>
    %21 = tpu.concatenate %13, %20 in 0 : vector<1x16x4xbf16>, vector<15x16x4xbf16> -> vector<16x16x4xbf16>
    %22 = vector.shape_cast %21 : vector<16x16x4xbf16> to vector<256x4xbf16>
    %23 = vector.extract_strided_slice %12 {offsets = [0, 0, 0], sizes = [15, 16, 4], strides = [1, 1, 1]} : vector<16x16x4xbf16> to vector<15x16x4xbf16>
    %24 = tpu.concatenate %13, %23 in 0 : vector<1x16x4xbf16>, vector<15x16x4xbf16> -> vector<16x16x4xbf16>
    %25 = vector.shape_cast %24 : vector<16x16x4xbf16> to vector<256x4xbf16>
    %26 = vector.extract_strided_slice %18 {offsets = [0, 0, 0], sizes = [15, 16, 4], strides = [1, 1, 1]} : vector<16x16x4xbf16> to vector<15x16x4xbf16>
    %27 = tpu.concatenate %13, %26 in 0 : vector<1x16x4xbf16>, vector<15x16x4xbf16> -> vector<16x16x4xbf16>
    %28 = vector.shape_cast %27 : vector<16x16x4xbf16> to vector<256x4xbf16>
    %29 = vector.shape_cast %16 : vector<16x16x4xbf16> to vector<256x4xbf16>
    %30 = vector.shape_cast %12 : vector<16x16x4xbf16> to vector<256x4xbf16>
    %31 = vector.shape_cast %18 : vector<16x16x4xbf16> to vector<256x4xbf16>
    %32 = vector.extract_strided_slice %16 {offsets = [1, 0, 0], sizes = [15, 16, 4], strides = [1, 1, 1]} : vector<16x16x4xbf16> to vector<15x16x4xbf16>
    %33 = tpu.concatenate %32, %13 in 0 : vector<15x16x4xbf16>, vector<1x16x4xbf16> -> vector<16x16x4xbf16>
    %34 = vector.shape_cast %33 : vector<16x16x4xbf16> to vector<256x4xbf16>
    %35 = vector.extract_strided_slice %12 {offsets = [1, 0, 0], sizes = [15, 16, 4], strides = [1, 1, 1]} : vector<16x16x4xbf16> to vector<15x16x4xbf16>
    %36 = tpu.concatenate %35, %13 in 0 : vector<15x16x4xbf16>, vector<1x16x4xbf16> -> vector<16x16x4xbf16>
    %37 = vector.shape_cast %36 : vector<16x16x4xbf16> to vector<256x4xbf16>
    %38 = vector.extract_strided_slice %18 {offsets = [1, 0, 0], sizes = [15, 16, 4], strides = [1, 1, 1]} : vector<16x16x4xbf16> to vector<15x16x4xbf16>
    %39 = tpu.concatenate %38, %13 in 0 : vector<15x16x4xbf16>, vector<1x16x4xbf16> -> vector<16x16x4xbf16>
    %40 = vector.shape_cast %39 : vector<16x16x4xbf16> to vector<256x4xbf16>
    %41 = tpu.concatenate %22, %25, %28, %29, %30, %31, %34, %37, %40 in 1 : vector<256x4xbf16>, vector<256x4xbf16>, vector<256x4xbf16>, vector<256x4xbf16>, vector<256x4xbf16>, vector<256x4xbf16>, vector<256x4xbf16>, vector<256x4xbf16>, vector<256x4xbf16> -> vector<256x36xbf16>
    %cst_12 = arith.constant dense<0.000000e+00> : vector<256x4xf32>
    %42 = tpu.matmul %41, %19, %cst_12 {dimension_numbers = #tpu.dot_dimension_numbers<[1], [0], [0], [1], [0, 0, 1, 1], [], []>} : vector<256x36xbf16>, vector<36x4xbf16>, vector<256x4xf32> -> vector<256x4xf32>
    %c0_13 = arith.constant 0 : index
    %c0_14 = arith.constant 0 : index
    %43 = vector.load %arg5[%c0_13, %c0_14] : memref<1x4xf32, #tpu.memory_space<vmem>>, vector<1x4xf32>
    %44 = vector.broadcast %43 : vector<1x4xf32> to vector<256x4xf32>
    %45 = arith.addf %42, %44 : vector<256x4xf32>
    %cst_15 = arith.constant 0.000000e+00 : f32
    %46 = vector.broadcast %cst_15 : f32 to vector<256x4xf32>
    %47 = arith.maximumf %45, %46 : vector<256x4xf32>
    %48 = arith.truncf %47 : vector<256x4xf32> to vector<256x4xbf16>
    %c0_16 = arith.constant 0 : index
    %c0_17 = arith.constant 0 : index
    %49 = vector.load %arg6[%c0_16, %c0_17] : memref<4x16xbf16, #tpu.memory_space<vmem>>, vector<4x16xbf16>
    %cst_18 = arith.constant dense<0.000000e+00> : vector<256x16xf32>
    %50 = tpu.matmul %48, %49, %cst_18 {dimension_numbers = #tpu.dot_dimension_numbers<[1], [0], [0], [1], [0, 0, 1, 1], [], []>} : vector<256x4xbf16>, vector<4x16xbf16>, vector<256x16xf32> -> vector<256x16xf32>
    %c0_19 = arith.constant 0 : index
    %c0_20 = arith.constant 0 : index
    %51 = vector.load %arg7[%c0_19, %c0_20] : memref<1x16xf32, #tpu.memory_space<vmem>>, vector<1x16xf32>
    %52 = vector.broadcast %51 : vector<1x16xf32> to vector<256x16xf32>
    %53 = arith.addf %50, %52 : vector<256x16xf32>
    %c0_21 = arith.constant 0 : index
    %c0_22 = arith.constant 0 : index
    %c0_23 = arith.constant 0 : index
    %c0_24 = arith.constant 0 : index
    %54 = vector.load %arg1[%c0_21, %c0_22, %c0_23, %c0_24] : memref<1x16x16x16xf32, #tpu.memory_space<vmem>>, vector<1x16x16x16xf32>
    %55 = vector.shape_cast %54 : vector<1x16x16x16xf32> to vector<16x16x16xf32>
    %56 = vector.shape_cast %55 : vector<16x16x16xf32> to vector<256x16xf32>
    %57 = arith.addf %53, %56 : vector<256x16xf32>
    %cst_25 = arith.constant 0.000000e+00 : f32
    %58 = vector.broadcast %cst_25 : f32 to vector<256x16xf32>
    %59 = arith.maximumf %57, %58 : vector<256x16xf32>
    %60 = vector.shape_cast %59 : vector<256x16xf32> to vector<16x16x16xf32>
    %c0_26 = arith.constant 0 : index
    %c0_27 = arith.constant 0 : index
    %c0_28 = arith.constant 0 : index
    %c0_29 = arith.constant 0 : index
    %61 = vector.load %arg8[%c0_26, %c0_27, %c0_28, %c0_29] : memref<1x16x16x16xf32, #tpu.memory_space<vmem>>, vector<1x16x16x16xf32>
    %62 = vector.shape_cast %61 : vector<1x16x16x16xf32> to vector<16x16x16xf32>
    %63 = vector.shape_cast %60 : vector<16x16x16xf32> to vector<1x16x16x16xf32>
    tpu.vector_store %arg8[%c0_26, %c0_27, %c0_28, %c0_29], %63 {strides = array<i32>} : memref<1x16x16x16xf32, #tpu.memory_space<vmem>>, vector<1x16x16x16xf32>,
    return
  }
  func.func @transform_0(%arg0: i32) -> (i32, i32, i32, i32) {
    %c0_i32 = arith.constant 0 : i32
    %c0_i32_0 = arith.constant 0 : i32
    %c0_i32_1 = arith.constant 0 : i32
    %c0_i32_2 = arith.constant 0 : i32
    return %arg0, %c0_i32, %c0_i32_0, %c0_i32_1 : i32, i32, i32, i32
  }
  func.func @transform_1(%arg0: i32) -> (i32, i32) {
    %c0_i32 = arith.constant 0 : i32
    %c0_i32_0 = arith.constant 0 : i32
    %c0_i32_1 = arith.constant 0 : i32
    return %c0_i32, %c0_i32_0 : i32, i32
  }
  func.func @transform_2(%arg0: i32) -> (i32, i32) {
    %c0_i32 = arith.constant 0 : i32
    %c0_i32_0 = arith.constant 0 : i32
    %c0_i32_1 = arith.constant 0 : i32
    return %c0_i32, %c0_i32_0 : i32, i32
  }
  func.func @transform_3(%arg0: i32) -> (i32, i32) {
    %c0_i32 = arith.constant 0 : i32
    %c0_i32_0 = arith.constant 0 : i32
    %c0_i32_1 = arith.constant 0 : i32
    return %c0_i32, %c0_i32_0 : i32, i32
  }
  func.func @transform_4(%arg0: i32) -> (i32, i32) {
    %c0_i32 = arith.constant 0 : i32
    %c0_i32_0 = arith.constant 0 : i32
    %c0_i32_1 = arith.constant 0 : i32
    return %c0_i32, %c0_i32_0 : i32, i32
  }
  func.func @transform_5(%arg0: i32) -> (i32, i32) {
    %c0_i32 = arith.constant 0 : i32
    %c0_i32_0 = arith.constant 0 : i32
    %c0_i32_1 = arith.constant 0 : i32
    return %c0_i32, %c0_i32_0 : i32, i32
  }
  func.func @transform_6(%arg0: i32) -> (i32, i32) {
    %c0_i32 = arith.constant 0 : i32
    %c0_i32_0 = arith.constant 0 : i32
    %c0_i32_1 = arith.constant 0 : i32
    return %c0_i32, %c0_i32_0 : i32, i32
  }
  func.func @transform_7(%arg0: i32) -> (i32, i32, i32, i32) {
    %c0_i32 = arith.constant 0 : i32
    %c0_i32_0 = arith.constant 0 : i32
    %c0_i32_1 = arith.constant 0 : i32
    %c0_i32_2 = arith.constant 0 : i32
    return %arg0, %c0_i32, %c0_i32_0, %c0_i32_1 : i32, i32, i32, i32
  }
}

</mosaic_0001>

<llo_original>
// kernel: tpu_custom_call.1
$region0: #{tpu_custom_call.1}
  #allocation0 [shape = 'u32[]', space=smem, size = 0x4, offset = 0x4, fixed_abs, tag = 'smem constant byte address 0x4 - core index']
  #allocation1 [shape = 'u32[72,128]{1,0:T(1,128)}', space=vmem, size = 0x9000, scoped, tag = 'internal scratch']
  %s0 = inlined_call_operand.hbm [shape: f32[2,16,16,16], index: 0, kind: input, shape index: {}]
  %s1 = inlined_call_operand.vmem [shape: bf16[16,4], index: 1, kind: input, shape index: {}]
  %s2 = inlined_call_operand.vmem [shape: f32[1,4], index: 2, kind: input, shape index: {}]
  %s3 = inlined_call_operand.vmem [shape: bf16[36,4], index: 3, kind: input, shape index: {}]
  %s4 = inlined_call_operand.vmem [shape: f32[1,4], index: 4, kind: input, shape index: {}]
  %s5 = inlined_call_operand.vmem [shape: bf16[4,16], index: 5, kind: input, shape index: {}]
  %s6 = inlined_call_operand.vmem [shape: f32[1,16], index: 6, kind: input, shape index: {}]
  %s7 = inlined_call_operand.hbm [shape: f32[2,16,16,16], index: 7, kind: output, shape index: {}]
  %s8 = sld [smem:[#allocation0]]
  $region65: #{tpu_custom_call.1} parent=0
    _
  %s10 = ssub.s32 1, %s8
  %s11 = scalar_select 0, %s10, %s8
  $region1: #{tpu_custom_call.1} parent=0
    #allocation2 [shape = 'u8[262144]{0}', space=vmem, size = 0x40000, scoped, tag = 'input window, operand 0']
    #allocation3 [shape = 's32[2]{0}', space=sflag, size = 0x8, scoped, tag = 'scoped memory for tpu_custom_call.1']
    #allocation4 [shape = 's32[2]{0}', space=sflag, size = 0x8, scoped, tag = 'scoped memory for tpu_custom_call.1']
    #allocation5 [shape = 'u8[262144]{0}', space=vmem, size = 0x40000, scoped, tag = 'output window, operand 0']
    %12 = vsyncpa [#allocation3], 0
    %s13 = scalar_lea.sflag [#allocation3], 1
    %14 = vsyncpa %s13, 0
    %15 = vsyncpa [#allocation4], 0
    %s16 = scalar_lea.sflag [#allocation4], 1
    %17 = vsyncpa %s16, 0
    loop: start=0, step=1, limit=4
    $region2: #{tpu_custom_call.1} parent=1 // loop_pre_header
      _
    $region3: #{tpu_custom_call.1} parent=1 // loop_header
      %s19 = sphi 0, %s23
      %p20 = scmp.ge.s32.totalorder %s19, 4
      %s29 = sphi 0, %s31
      %s32 = sphi 0, %s29
      %s33 = sphi 0, %s32
      %s49 = sphi 0, %s33
      %s53 = sphi 0, %s53
      %s55 = sphi 0, %s53
      %s56 = sphi 0, %s55
      %s70 = sphi 0, %s56
      %s74 = sphi 0, %s74
      %s76 = sphi 0, %s74
      %s77 = sphi 0, %s76
      %s91 = sphi 0, %s77
      %s95 = sphi 0, %s95
      %s97 = sphi 0, %s95
      %s98 = sphi 0, %s97
      %s112 = sphi 0, %s98
      %s116 = sphi 0, %s116
      %s118 = sphi 0, %s116
      %s119 = sphi 0, %s118
      %s133 = sphi 0, %s119
      %s137 = sphi 0, %s137
      %s139 = sphi 0, %s137
      %s140 = sphi 0, %s139
      %s154 = sphi 0, %s140
      %s158 = sphi 0, %s158
      %s160 = sphi 0, %s158
      %s161 = sphi 0, %s160
      %s175 = sphi 0, %s161
      %s181 = sphi 0, %s183
      %s184 = sphi 0, %s181
      %s185 = sphi 0, %s184
      %s201 = sphi 0, %s185
    $region4: #{tpu_custom_call.1} parent=1 // loop_header_branch
      %22 = sbr.rel (%p20) target = $region8
    $region5: #{tpu_custom_call.1} parent=1 // loop_body
      %s24 = ssub.s32 %s19, 1
      %s25 = ssub.s32 %s19, 2
      %s26 = sadd.s32 %s19, 1
      %s27 = ssub.s32 %s19, %s26
      %p28 = scmp.eq.s32.totalorder %s27, 0
      %s30 = sadd.s32 %s29, 1
      %s31 = scalar_select %p28, %s29, %s30
      %p34 = pneg %p28
      %p35 = scmp.eq.s32.totalorder %s19, 1
      %p36 = por %p34, %p35
      %p37 = scmp.ne.s32.totalorder %s29, %s32
      %p38 = scmp.eq.s32.totalorder %s19, 0
      %p39 = por %p37, %p38
      %p40 = scmp.ne.s32.totalorder %s29, %s32
      %p41 = scmp.eq.s32.totalorder %s24, 1
      %p42 = por %p40, %p41
      %p43 = scmp.ne.s32.totalorder %s32, %s33
      %p44 = scmp.eq.s32.totalorder %s24, 0
      %p45 = por %p43, %p44
      %p46 = scmp.ne.s32.totalorder %s32, %s33
      %p47 = scmp.eq.s32.totalorder %s25, 1
      %p48 = por %p46, %p47
      %p50 = scmp.ne.s32.totalorder %s33, %s49
      %p51 = scmp.eq.s32.totalorder %s25, 0
      %p52 = por %p50, %p51
      %s54 = sadd.s32 %s53, 1
      %p57 = scmp.eq.s32.totalorder %s19, 1
      %p58 = scmp.ne.s32.totalorder %s53, %s55
      %p59 = scmp.eq.s32.totalorder %s19, 0
      %p60 = por %p58, %p59
      %p61 = scmp.ne.s32.totalorder %s53, %s55
      %p62 = scmp.eq.s32.totalorder %s24, 1
      %p63 = por %p61, %p62
      %p64 = scmp.ne.s32.totalorder %s55, %s56
      %p65 = scmp.eq.s32.totalorder %s24, 0
      %p66 = por %p64, %p65
      %p67 = scmp.ne.s32.totalorder %s55, %s56
      %p68 = scmp.eq.s32.totalorder %s25, 1
      %p69 = por %p67, %p68
      %p71 = scmp.ne.s32.totalorder %s56, %s70
      %p72 = scmp.eq.s32.totalorder %s25, 0
      %p73 = por %p71, %p72
      %s75 = sadd.s32 %s74, 1
      %p78 = scmp.eq.s32.totalorder %s19, 1
      %p79 = scmp.ne.s32.totalorder %s74, %s76
      %p80 = scmp.eq.s32.totalorder %s19, 0
      %p81 = por %p79, %p80
      %p82 = scmp.ne.s32.totalorder %s74, %s76
      %p83 = scmp.eq.s32.totalorder %s24, 1
      %p84 = por %p82, %p83
      %p85 = scmp.ne.s32.totalorder %s76, %s77
      %p86 = scmp.eq.s32.totalorder %s24, 0
      %p87 = por %p85, %p86
      %p88 = scmp.ne.s32.totalorder %s76, %s77
      %p89 = scmp.eq.s32.totalorder %s25, 1
      %p90 = por %p88, %p89
      %p92 = scmp.ne.s32.totalorder %s77, %s91
      %p93 = scmp.eq.s32.totalorder %s25, 0
      %p94 = por %p92, %p93
      %s96 = sadd.s32 %s95, 1
      %p99 = scmp.eq.s32.totalorder %s19, 1
      %p100 = scmp.ne.s32.totalorder %s95, %s97
      %p101 = scmp.eq.s32.totalorder %s19, 0
      %p102 = por %p100, %p101
      %p103 = scmp.ne.s32.totalorder %s95, %s97
      %p104 = scmp.eq.s32.totalorder %s24, 1
      %p105 = por %p103, %p104
      %p106 = scmp.ne.s32.totalorder %s97, %s98
      %p107 = scmp.eq.s32.totalorder %s24, 0
      %p108 = por %p106, %p107
      %p109 = scmp.ne.s32.totalorder %s97, %s98
      %p110 = scmp.eq.s32.totalorder %s25, 1
      %p111 = por %p109, %p110
      %p113 = scmp.ne.s32.totalorder %s98, %s112
      %p114 = scmp.eq.s32.totalorder %s25, 0
      %p115 = por %p113, %p114
      %s117 = sadd.s32 %s116, 1
      %p120 = scmp.eq.s32.totalorder %s19, 1
      %p121 = scmp.ne.s32.totalorder %s116, %s118
      %p122 = scmp.eq.s32.totalorder %s19, 0
      %p123 = por %p121, %p122
      %p124 = scmp.ne.s32.totalorder %s116, %s118
      %p125 = scmp.eq.s32.totalorder %s24, 1
      %p126 = por %p124, %p125
      %p127 = scmp.ne.s32.totalorder %s118, %s119
      %p128 = scmp.eq.s32.totalorder %s24, 0
      %p129 = por %p127, %p128
      %p130 = scmp.ne.s32.totalorder %s118, %s119
      %p131 = scmp.eq.s32.totalorder %s25, 1
      %p132 = por %p130, %p131
      %p134 = scmp.ne.s32.totalorder %s119, %s133
      %p135 = scmp.eq.s32.totalorder %s25, 0
      %p136 = por %p134, %p135
      %s138 = sadd.s32 %s137, 1
      %p141 = scmp.eq.s32.totalorder %s19, 1
      %p142 = scmp.ne.s32.totalorder %s137, %s139
      %p143 = scmp.eq.s32.totalorder %s19, 0
      %p144 = por %p142, %p143
      %p145 = scmp.ne.s32.totalorder %s137, %s139
      %p146 = scmp.eq.s32.totalorder %s24, 1
      %p147 = por %p145, %p146
      %p148 = scmp.ne.s32.totalorder %s139, %s140
      %p149 = scmp.eq.s32.totalorder %s24, 0
      %p150 = por %p148, %p149
      %p151 = scmp.ne.s32.totalorder %s139, %s140
      %p152 = scmp.eq.s32.totalorder %s25, 1
      %p153 = por %p151, %p152
      %p155 = scmp.ne.s32.totalorder %s140, %s154
      %p156 = scmp.eq.s32.totalorder %s25, 0
      %p157 = por %p155, %p156
      %s159 = sadd.s32 %s158, 1
      %p162 = scmp.eq.s32.totalorder %s19, 1
      %p163 = scmp.ne.s32.totalorder %s158, %s160
      %p164 = scmp.eq.s32.totalorder %s19, 0
      %p165 = por %p163, %p164
      %p166 = scmp.ne.s32.totalorder %s158, %s160
      %p167 = scmp.eq.s32.totalorder %s24, 1
      %p168 = por %p166, %p167
      %p169 = scmp.ne.s32.totalorder %s160, %s161
      %p170 = scmp.eq.s32.totalorder %s24, 0
      %p171 = por %p169, %p170
      %p172 = scmp.ne.s32.totalorder %s160, %s161
      %p173 = scmp.eq.s32.totalorder %s25, 1
      %p174 = por %p172, %p173
      %p176 = scmp.ne.s32.totalorder %s161, %s175
      %p177 = scmp.eq.s32.totalorder %s25, 0
      %p178 = por %p176, %p177
      %s179 = ssub.s32 %s19, %s26
      %p180 = scmp.eq.s32.totalorder %s179, 0
      %s182 = sadd.s32 %s181, 1
      %s183 = scalar_select %p180, %s181, %s182
      %p186 = pneg %p180
      %p187 = scmp.eq.s32.totalorder %s19, 1
      %p188 = por %p186, %p187
      %p189 = scmp.ne.s32.totalorder %s181, %s184
      %p190 = scmp.eq.s32.totalorder %s19, 0
      %p191 = por %p189, %p190
      %p192 = scmp.ne.s32.totalorder %s181, %s184
      %p193 = scmp.eq.s32.totalorder %s24, 1
      %p194 = por %p192, %p193
      %p195 = scmp.ne.s32.totalorder %s184, %s185
      %p196 = scmp.eq.s32.totalorder %s24, 0
      %p197 = por %p195, %p196
      %p198 = scmp.ne.s32.totalorder %s184, %s185
      %p199 = scmp.eq.s32.totalorder %s25, 1
      %p200 = por %p198, %p199
      %p202 = scmp.ne.s32.totalorder %s185, %s201
      %p203 = scmp.eq.s32.totalorder %s25, 0
      %p204 = por %p202, %p203
      %p205 = scmp.le.s32.totalorder 1, %s19
      %p206 = scmp.lt.s32.totalorder %s19, 3
      %p207 = pnand %p205, %p206
      %p208 = pneg %p207
      // Predicated region
      $region9: #{tpu_custom_call.1} parent=5 // pred_check
        _
      $region10: #{tpu_custom_call.1} parent=5 // pred_check_branch
        %210 = sbr.rel (%p207) target = $region12
      $region11: #{tpu_custom_call.1} parent=5 // pred_region
        %s211 = ssub.s32 %s19, 1
        // Predicated region
        $region13: #{tpu_custom_call.1} parent=11 // pred_check
          %p212 = pneg %p66
        $region14: #{tpu_custom_call.1} parent=11 // pred_check_branch
          %214 = sbr.rel (%p212) target = $region16
        $region15: #{tpu_custom_call.1} parent=11 // pred_region
          _
        $region16: #{tpu_custom_call.1} parent=11 // pred_fallthru
          _
        // Predicated region
        $region17: #{tpu_custom_call.1} parent=11 // pred_check
          %p215 = pneg %p87
        $region18: #{tpu_custom_call.1} parent=11 // pred_check_branch
          %217 = sbr.rel (%p215) target = $region20
        $region19: #{tpu_custom_call.1} parent=11 // pred_region
          _
        $region20: #{tpu_custom_call.1} parent=11 // pred_fallthru
          _
        // Predicated region
        $region21: #{tpu_custom_call.1} parent=11 // pred_check
          %p218 = pneg %p108
        $region22: #{tpu_custom_call.1} parent=11 // pred_check_branch
          %220 = sbr.rel (%p218) target = $region24
        $region23: #{tpu_custom_call.1} parent=11 // pred_region
          _
        $region24: #{tpu_custom_call.1} parent=11 // pred_fallthru
          _
        // Predicated region
        $region25: #{tpu_custom_call.1} parent=11 // pred_check
          %p221 = pneg %p129
        $region26: #{tpu_custom_call.1} parent=11 // pred_check_branch
          %223 = sbr.rel (%p221) target = $region28
        $region27: #{tpu_custom_call.1} parent=11 // pred_region
          _
        $region28: #{tpu_custom_call.1} parent=11 // pred_fallthru
          _
        // Predicated region
        $region29: #{tpu_custom_call.1} parent=11 // pred_check
          %p224 = pneg %p150
        $region30: #{tpu_custom_call.1} parent=11 // pred_check_branch
          %226 = sbr.rel (%p224) target = $region32
        $region31: #{tpu_custom_call.1} parent=11 // pred_region
          _
        $region32: #{tpu_custom_call.1} parent=11 // pred_fallthru
          _
        // Predicated region
        $region33: #{tpu_custom_call.1} parent=11 // pred_check
          %p227 = pneg %p171
        $region34: #{tpu_custom_call.1} parent=11 // pred_check_branch
          %229 = sbr.rel (%p227) target = $region36
        $region35: #{tpu_custom_call.1} parent=11 // pred_region
          _
        $region36: #{tpu_custom_call.1} parent=11 // pred_fallthru
          _
      $region12: #{tpu_custom_call.1} parent=5 // pred_fallthru
        _
      %p230 = scmp.lt.s32.totalorder %s19, 2
      // Predicated region
      $region37: #{tpu_custom_call.1} parent=5 // pred_check
        %p231 = pneg %p230
      $region38: #{tpu_custom_call.1} parent=5 // pred_check_branch
        %233 = sbr.rel (%p231) target = $region40
      $region39: #{tpu_custom_call.1} parent=5 // pred_region
        // Predicated region
        $region41: #{tpu_custom_call.1} parent=39 // pred_check
          %p234 = pneg %p39
        $region42: #{tpu_custom_call.1} parent=39 // pred_check_branch
          %236 = sbr.rel (%p234) target = $region44
        $region43: #{tpu_custom_call.1} parent=39 // pred_region
          %s237 = sand.u32 %s29, 1
          %s238 = scalar_lea.sflag [#allocation3], %s237
          %s239 = sand.u32 %s29, 1
          %s240 = smul.addr %s239, 256
          %s241 = scalar_lea.vmem [#allocation2], %s240
          %243 = vsyncadd %s238, 0
          %s244 = smul.addr %s19, 32
          %s245 = smul.addr %s244, 8
          %s246 = scalar_lea.hbm %s0, %s245
          %s247 = sshll.u32 %s246, 4
          %s248 = int_to_ptr.hbm [resolvable:$true] %s247
          %s249 = sshll.u32 %s241, 4
          %s250 = int_to_ptr.vmem [resolvable:$true] %s249
          %255 = dma.hbm_to_vmem [thread:$0]  %s248, 4096, %s250, %s238, 128, 128, 8
        $region44: #{tpu_custom_call.1} parent=39 // pred_fallthru
          _
      $region40: #{tpu_custom_call.1} parent=5 // pred_fallthru
        _
      %p256 = scmp.le.s32.totalorder 1, %s19
      %p257 = scmp.lt.s32.totalorder %s19, 3
      %p258 = pnand %p256, %p257
      %p259 = pneg %p258
      // Predicated region
      $region45: #{tpu_custom_call.1} parent=5 // pred_check
        _
      $region46: #{tpu_custom_call.1} parent=5 // pred_check_branch
        %261 = sbr.rel (%p258) target = $region48
      $region47: #{tpu_custom_call.1} parent=5 // pred_region
        %s262 = ssub.s32 %s19, 1
        %s263 = sand.u32 %s32, 1
        %s264 = scalar_lea.sflag [#allocation3], %s263
        %s265 = sand.u32 %s32, 1
        %s266 = smul.addr %s265, 256
        %s267 = scalar_lea.vmem [#allocation2], %s266
        // Predicated region
        $region49: #{tpu_custom_call.1} parent=47 // pred_check
          %p268 = pneg %p45
        $region50: #{tpu_custom_call.1} parent=47 // pred_check_branch
          %270 = sbr.rel (%p268) target = $region52
        $region51: #{tpu_custom_call.1} parent=47 // pred_region
          %272 = dma.done %s264, 4096
        $region52: #{tpu_custom_call.1} parent=47 // pred_fallthru
          _
        %s273 = sand.u32 %s32, 1
        %s274 = scalar_lea.sflag [#allocation3], %s273
        %s275 = sand.u32 %s32, 1
        %s276 = smul.addr %s275, 256
        %s277 = scalar_lea.vmem [#allocation2], %s276
        %p278 = pneg %p45
        %p279 = pneg %p42
        %p280 = pneg %p66
        %p281 = pneg %p63
        %p282 = pneg %p87
        %p283 = pneg %p84
        %p284 = pneg %p108
        %p285 = pneg %p105
        %p286 = pneg %p129
        %p287 = pneg %p126
        %p288 = pneg %p150
        %p289 = pneg %p147
        %p290 = pneg %p171
        %p291 = pneg %p168
        %p292 = pneg %p197
        %p293 = pneg %p194
        %s294 = sand.u32 %s184, 1
        %s295 = scalar_lea.sflag [#allocation4], %s294
        %s296 = sand.u32 %s184, 1
        %s297 = smul.addr %s296, 256
        %s298 = scalar_lea.vmem [#allocation5], %s297
        %v300 = vld [vmem:[%s267] sm:$0xff]
        %v301 = vld [vmem:[%s267 + $0x8] sm:$0xff]
        %v302 = vld [vmem:[%s267 + $0x10] sm:$0xff]
        %v303 = vld [vmem:[%s267 + $0x18] sm:$0xff]
        %v304 = vld [vmem:[%s267 + $0x20] sm:$0xff]
        %v305 = vld [vmem:[%s267 + $0x28] sm:$0xff]
        %v306 = vld [vmem:[%s267 + $0x30] sm:$0xff]
        %v307 = vld [vmem:[%s267 + $0x38] sm:$0xff]
        %v308 = vld [vmem:[%s267 + $0x40] sm:$0xff]
        %v309 = vld [vmem:[%s267 + $0x48] sm:$0xff]
        %v310 = vld [vmem:[%s267 + $0x50] sm:$0xff]
        %v311 = vld [vmem:[%s267 + $0x58] sm:$0xff]
        %v312 = vld [vmem:[%s267 + $0x60] sm:$0xff]
        %v313 = vld [vmem:[%s267 + $0x68] sm:$0xff]
        %v314 = vld [vmem:[%s267 + $0x70] sm:$0xff]
        %v315 = vld [vmem:[%s267 + $0x78] sm:$0xff]
        %v316 = vld [vmem:[%s267 + $0x80] sm:$0xff]
        %v317 = vld [vmem:[%s267 + $0x88] sm:$0xff]
        %v318 = vld [vmem:[%s267 + $0x90] sm:$0xff]
        %v319 = vld [vmem:[%s267 + $0x98] sm:$0xff]
        %v320 = vld [vmem:[%s267 + $0xa0] sm:$0xff]
        %v321 = vld [vmem:[%s267 + $0xa8] sm:$0xff]
        %v322 = vld [vmem:[%s267 + $0xb0] sm:$0xff]
        %v323 = vld [vmem:[%s267 + $0xb8] sm:$0xff]
        %v324 = vld [vmem:[%s267 + $0xc0] sm:$0xff]
        %v325 = vld [vmem:[%s267 + $0xc8] sm:$0xff]
        %v326 = vld [vmem:[%s267 + $0xd0] sm:$0xff]
        %v327 = vld [vmem:[%s267 + $0xd8] sm:$0xff]
        %v328 = vld [vmem:[%s267 + $0xe0] sm:$0xff]
        %v329 = vld [vmem:[%s267 + $0xe8] sm:$0xff]
        %v330 = vld [vmem:[%s267 + $0xf0] sm:$0xff]
        %v331 = vld [vmem:[%s267 + $0xf8] sm:$0xff]
        %v332 = vpack.c.bf16 %v301, %v300
        %v333 = vpack.c.bf16 %v303, %v302
        %v334 = vpack.c.bf16 %v305, %v304
        %v335 = vpack.c.bf16 %v307, %v306
        %v336 = vpack.c.bf16 %v309, %v308
        %v337 = vpack.c.bf16 %v311, %v310
        %v338 = vpack.c.bf16 %v313, %v312
        %v339 = vpack.c.bf16 %v315, %v314
        %v340 = vpack.c.bf16 %v317, %v316
        %v341 = vpack.c.bf16 %v319, %v318
        %v342 = vpack.c.bf16 %v321, %v320
        %v343 = vpack.c.bf16 %v323, %v322
        %v344 = vpack.c.bf16 %v325, %v324
        %v345 = vpack.c.bf16 %v327, %v326
        %v346 = vpack.c.bf16 %v329, %v328
        %v347 = vpack.c.bf16 %v331, %v330
        %v348 = vld [vmem:[%s1] sm:$0xf]
        %v349 = vld [vmem:[%s1 + $0x4] sm:$0xf]
        %v350 = vld [vmem:[%s2] sm:$0x1]
        %v352 = vperm.slane %v350, 0
        %v356 = vunpack.c.l.b16 %v348
        %v357 = vunpack.c.l.b16 %v349
        %v358 = vpack.c.b16 %v357, %v356
        %vm360 = vcmask 130048
        %v362 = vsel %vm360, %v332, 0
        %v365 = vsel %vm360, %v333, 0
        %v368 = vsel %vm360, %v334, 0
        %v371 = vsel %vm360, %v335, 0
        %v374 = vsel %vm360, %v336, 0
        %v377 = vsel %vm360, %v337, 0
        %v380 = vsel %vm360, %v338, 0
        %v383 = vsel %vm360, %v339, 0
        %v386 = vsel %vm360, %v340, 0
        %v389 = vsel %vm360, %v341, 0
        %v392 = vsel %vm360, %v342, 0
        %v395 = vsel %vm360, %v343, 0
        %v398 = vsel %vm360, %v344, 0
        %v401 = vsel %vm360, %v345, 0
        %v404 = vsel %vm360, %v346, 0
        %v407 = vsel %vm360, %v347, 0
        %409 = vmatpush.bf16.msra.mxu0 0
        %410 = vmatpush.bf16.msra.mxu0 0
        %411 = vmatpush.bf16.msra.mxu0 0
        %412 = vmatpush.bf16.msra.mxu0 0
        %413 = vmatpush.bf16.msra.mxu0 0
        %414 = vmatpush.bf16.msra.mxu0 0
        %415 = vmatpush.bf16.msra.mxu0 0
        %416 = vmatpush.bf16.msra.mxu0 %v358
        %417 = vmatmul.bf16.gmra.mxu0 %v362
        %v418 = vpop.f32.mrf.mxu0
        %v419 = vadd.f32 %v352, %v418
        %v420 = vpop.f32.mrf.mxu0
        %v421 = vadd.f32 %v352, %v420
        %422 = vmatmul.bf16.gmra.mxu0 %v365
        %v423 = vpop.f32.mrf.mxu0
        %v424 = vadd.f32 %v352, %v423
        %v425 = vpop.f32.mrf.mxu0
        %v426 = vadd.f32 %v352, %v425
        %427 = vmatmul.bf16.gmra.mxu0 %v368
        %v428 = vpop.f32.mrf.mxu0
        %v429 = vadd.f32 %v352, %v428
        %v430 = vpop.f32.mrf.mxu0
        %v431 = vadd.f32 %v352, %v430
        %432 = vmatmul.bf16.gmra.mxu0 %v371
        %v433 = vpop.f32.mrf.mxu0
        %v434 = vadd.f32 %v352, %v433
        %v435 = vpop.f32.mrf.mxu0
        %v436 = vadd.f32 %v352, %v435
        %437 = vmatmul.bf16.gmra.mxu0 %v374
        %v438 = vpop.f32.mrf.mxu0
        %v439 = vadd.f32 %v352, %v438
        %v440 = vpop.f32.mrf.mxu0
        %v441 = vadd.f32 %v352, %v440
        %442 = vmatmul.bf16.gmra.mxu0 %v377
        %v443 = vpop.f32.mrf.mxu0
        %v444 = vadd.f32 %v352, %v443
        %v445 = vpop.f32.mrf.mxu0
        %v446 = vadd.f32 %v352, %v445
        %447 = vmatmul.bf16.gmra.mxu0 %v380
        %v448 = vpop.f32.mrf.mxu0
        %v449 = vadd.f32 %v352, %v448
        %v450 = vpop.f32.mrf.mxu0
        %v451 = vadd.f32 %v352, %v450
        %452 = vmatmul.bf16.gmra.mxu0 %v383
        %v453 = vpop.f32.mrf.mxu0
        %v454 = vadd.f32 %v352, %v453
        %v455 = vpop.f32.mrf.mxu0
        %v456 = vadd.f32 %v352, %v455
        %457 = vmatmul.bf16.gmra.mxu0 %v386
        %v458 = vpop.f32.mrf.mxu0
        %v459 = vadd.f32 %v352, %v458
        %v460 = vpop.f32.mrf.mxu0
        %v461 = vadd.f32 %v352, %v460
        %462 = vmatmul.bf16.gmra.mxu0 %v389
        %v463 = vpop.f32.mrf.mxu0
        %v464 = vadd.f32 %v352, %v463
        %v465 = vpop.f32.mrf.mxu0
        %v466 = vadd.f32 %v352, %v465
        %467 = vmatmul.bf16.gmra.mxu0 %v392
        %v468 = vpop.f32.mrf.mxu0
        %v469 = vadd.f32 %v352, %v468
        %v470 = vpop.f32.mrf.mxu0
        %v471 = vadd.f32 %v352, %v470
        %472 = vmatmul.bf16.gmra.mxu0 %v395
        %v473 = vpop.f32.mrf.mxu0
        %v474 = vadd.f32 %v352, %v473
        %v475 = vpop.f32.mrf.mxu0
        %v476 = vadd.f32 %v352, %v475
        %477 = vmatmul.bf16.gmra.mxu0 %v398
        %v478 = vpop.f32.mrf.mxu0
        %v479 = vadd.f32 %v352, %v478
        %v480 = vpop.f32.mrf.mxu0
        %v481 = vadd.f32 %v352, %v480
        %482 = vmatmul.bf16.gmra.mxu0 %v401
        %v483 = vpop.f32.mrf.mxu0
        %v484 = vadd.f32 %v352, %v483
        %v485 = vpop.f32.mrf.mxu0
        %v486 = vadd.f32 %v352, %v485
        %487 = vmatmul.bf16.gmra.mxu0 %v404
        %v488 = vpop.f32.mrf.mxu0
        %v489 = vadd.f32 %v352, %v488
        %v490 = vpop.f32.mrf.mxu0
        %v491 = vadd.f32 %v352, %v490
        %492 = vmatmul.bf16.gmra.mxu0 %v407
        %v493 = vpop.f32.mrf.mxu0
        %v494 = vadd.f32 %v352, %v493
        %v495 = vpop.f32.mrf.mxu0
        %v496 = vadd.f32 %v352, %v495
        %497 = vdwg.mxu0
        %v498 = vmax.f32 %v419, 0.0
        %v499 = vmax.f32 %v421, 0.0
        %v500 = vmax.f32 %v424, 0.0
        %v501 = vmax.f32 %v426, 0.0
        %v502 = vmax.f32 %v429, 0.0
        %v503 = vmax.f32 %v431, 0.0
        %v504 = vmax.f32 %v434, 0.0
        %v505 = vmax.f32 %v436, 0.0
        %v506 = vmax.f32 %v439, 0.0
        %v507 = vmax.f32 %v441, 0.0
        %v508 = vmax.f32 %v444, 0.0
        %v509 = vmax.f32 %v446, 0.0
        %v510 = vmax.f32 %v449, 0.0
        %v511 = vmax.f32 %v451, 0.0
        %v512 = vmax.f32 %v454, 0.0
        %v513 = vmax.f32 %v456, 0.0
        %v514 = vmax.f32 %v459, 0.0
        %v515 = vmax.f32 %v461, 0.0
        %v516 = vmax.f32 %v464, 0.0
        %v517 = vmax.f32 %v466, 0.0
        %v518 = vmax.f32 %v469, 0.0
        %v519 = vmax.f32 %v471, 0.0
        %v520 = vmax.f32 %v474, 0.0
        %v521 = vmax.f32 %v476, 0.0
        %v522 = vmax.f32 %v479, 0.0
        %v523 = vmax.f32 %v481, 0.0
        %v524 = vmax.f32 %v484, 0.0
        %v525 = vmax.f32 %v486, 0.0
        %v526 = vmax.f32 %v489, 0.0
        %v527 = vmax.f32 %v491, 0.0
        %v528 = vmax.f32 %v494, 0.0
        %v529 = vmax.f32 %v496, 0.0
        %v530 = vpack.c.bf16 %v498, %v498
        %v531 = vpack.c.bf16 %v499, %v499
        %v532 = vpack.c.bf16 %v500, %v500
        %v533 = vpack.c.bf16 %v501, %v501
        %v534 = vpack.c.bf16 %v502, %v502
        %v535 = vpack.c.bf16 %v503, %v503
        %v536 = vpack.c.bf16 %v504, %v504
        %v537 = vpack.c.bf16 %v505, %v505
        %v538 = vpack.c.bf16 %v506, %v506
        %v539 = vpack.c.bf16 %v507, %v507
        %v540 = vpack.c.bf16 %v508, %v508
        %v541 = vpack.c.bf16 %v509, %v509
        %v542 = vpack.c.bf16 %v510, %v510
        %v543 = vpack.c.bf16 %v511, %v511
        %v544 = vpack.c.bf16 %v512, %v512
        %v545 = vpack.c.bf16 %v513, %v513
        %v546 = vpack.c.bf16 %v514, %v514
        %v547 = vpack.c.bf16 %v515, %v515
        %v548 = vpack.c.bf16 %v516, %v516
        %v549 = vpack.c.bf16 %v517, %v517
        %v550 = vpack.c.bf16 %v518, %v518
        %v551 = vpack.c.bf16 %v519, %v519
        %v552 = vpack.c.bf16 %v520, %v520
        %v553 = vpack.c.bf16 %v521, %v521
        %v554 = vpack.c.bf16 %v522, %v522
        %v555 = vpack.c.bf16 %v523, %v523
        %v556 = vpack.c.bf16 %v524, %v524
        %v557 = vpack.c.bf16 %v525, %v525
        %v558 = vpack.c.bf16 %v526, %v526
        %v559 = vpack.c.bf16 %v527, %v527
        %v560 = vpack.c.bf16 %v528, %v528
        %v561 = vpack.c.bf16 %v529, %v529
        %v594 = vunpack.c.l.b16 %v530
        %v595 = vunpack.c.l.b16 %v531
        %v596 = vunpack.c.l.b16 %v532
        %v597 = vunpack.c.l.b16 %v533
        %v598 = vunpack.c.l.b16 %v534
        %v599 = vunpack.c.l.b16 %v535
        %v600 = vunpack.c.l.b16 %v536
        %v601 = vunpack.c.l.b16 %v537
        %v602 = vunpack.c.l.b16 %v538
        %v603 = vunpack.c.l.b16 %v539
        %v604 = vunpack.c.l.b16 %v540
        %v605 = vunpack.c.l.b16 %v541
        %v606 = vunpack.c.l.b16 %v542
        %v607 = vunpack.c.l.b16 %v543
        %v608 = vunpack.c.l.b16 %v544
        %v609 = vunpack.c.l.b16 %v545
        %v610 = vunpack.c.l.b16 %v546
        %v611 = vunpack.c.l.b16 %v547
        %v612 = vunpack.c.l.b16 %v548
        %v613 = vunpack.c.l.b16 %v549
        %v614 = vunpack.c.l.b16 %v550
        %v615 = vunpack.c.l.b16 %v551
        %v616 = vunpack.c.l.b16 %v552
        %v617 = vunpack.c.l.b16 %v553
        %v618 = vunpack.c.l.b16 %v554
        %v619 = vunpack.c.l.b16 %v555
        %v620 = vunpack.c.l.b16 %v556
        %v621 = vunpack.c.l.b16 %v557
        %v622 = vunpack.c.l.b16 %v558
        %v623 = vunpack.c.l.b16 %v559
        %v624 = vunpack.c.l.b16 %v560
        %v625 = vunpack.c.l.b16 %v561
        %v626 = vpack.c.b16 %v595, %v594
        %v627 = vpack.c.b16 %v597, %v596
        %v628 = vpack.c.b16 %v599, %v598
        %v629 = vpack.c.b16 %v601, %v600
        %v630 = vpack.c.b16 %v603, %v602
        %v631 = vpack.c.b16 %v605, %v604
        %v632 = vpack.c.b16 %v607, %v606
        %v633 = vpack.c.b16 %v609, %v608
        %v634 = vpack.c.b16 %v611, %v610
        %v635 = vpack.c.b16 %v613, %v612
        %v636 = vpack.c.b16 %v615, %v614
        %v637 = vpack.c.b16 %v617, %v616
        %v638 = vpack.c.b16 %v619, %v618
        %v639 = vpack.c.b16 %v621, %v620
        %v640 = vpack.c.b16 %v623, %v622
        %v641 = vpack.c.b16 %v625, %v624
        %v643 = vshrl.u32 %v626, 16
        %v645 = vrot.slane %v643, 7
        %v646 = vshll.u32 %v626, 16
        %v648 = vor.u32 %v645, %v646
        %v650 = vshrl.u32 %v627, 16
        %v652 = vrot.slane %v650, 7
        %v653 = vshll.u32 %v627, 16
        %v655 = vor.u32 %v652, %v653
        %v657 = vshrl.u32 %v628, 16
        %v659 = vrot.slane %v657, 7
        %v660 = vshll.u32 %v628, 16
        %v662 = vor.u32 %v659, %v660
        %v664 = vshrl.u32 %v629, 16
        %v666 = vrot.slane %v664, 7
        %v667 = vshll.u32 %v629, 16
        %v669 = vor.u32 %v666, %v667
        %v671 = vshrl.u32 %v630, 16
        %v673 = vrot.slane %v671, 7
        %v674 = vshll.u32 %v630, 16
        %v676 = vor.u32 %v673, %v674
        %v678 = vshrl.u32 %v631, 16
        %v680 = vrot.slane %v678, 7
        %v681 = vshll.u32 %v631, 16
        %v683 = vor.u32 %v680, %v681
        %v685 = vshrl.u32 %v632, 16
        %v687 = vrot.slane %v685, 7
        %v688 = vshll.u32 %v632, 16
        %v690 = vor.u32 %v687, %v688
        %v692 = vshrl.u32 %v633, 16
        %v694 = vrot.slane %v692, 7
        %v695 = vshll.u32 %v633, 16
        %v697 = vor.u32 %v694, %v695
        %v699 = vshrl.u32 %v634, 16
        %v701 = vrot.slane %v699, 7
        %v702 = vshll.u32 %v634, 16
        %v704 = vor.u32 %v701, %v702
        %v706 = vshrl.u32 %v635, 16
        %v708 = vrot.slane %v706, 7
        %v709 = vshll.u32 %v635, 16
        %v711 = vor.u32 %v708, %v709
        %v713 = vshrl.u32 %v636, 16
        %v715 = vrot.slane %v713, 7
        %v716 = vshll.u32 %v636, 16
        %v718 = vor.u32 %v715, %v716
        %v720 = vshrl.u32 %v637, 16
        %v722 = vrot.slane %v720, 7
        %v723 = vshll.u32 %v637, 16
        %v725 = vor.u32 %v722, %v723
        %v727 = vshrl.u32 %v638, 16
        %v729 = vrot.slane %v727, 7
        %v730 = vshll.u32 %v638, 16
        %v732 = vor.u32 %v729, %v730
        %v734 = vshrl.u32 %v639, 16
        %v736 = vrot.slane %v734, 7
        %v737 = vshll.u32 %v639, 16
        %v739 = vor.u32 %v736, %v737
        %v741 = vshrl.u32 %v640, 16
        %v743 = vrot.slane %v741, 7
        %v744 = vshll.u32 %v640, 16
        %v746 = vor.u32 %v743, %v744
        %v748 = vshrl.u32 %v641, 16
        %v750 = vrot.slane %v748, 7
        %v751 = vshll.u32 %v641, 16
        %v753 = vor.u32 %v750, %v751
        %vm770 = vcmask 1040384
        %vm771 = vsmask.f32 256
        %vm772 = vmand %vm770, %vm771
        %v773 = vsel %vm772, 0, %v648
        %v774 = vsel %vm772, 0, %v655
        %v775 = vsel %vm772, 0, %v662
        %v776 = vsel %vm772, 0, %v669
        %v777 = vsel %vm772, 0, %v676
        %v778 = vsel %vm772, 0, %v683
        %v779 = vsel %vm772, 0, %v690
        %v780 = vsel %vm772, 0, %v697
        %v781 = vsel %vm772, 0, %v704
        %v782 = vsel %vm772, 0, %v711
        %v783 = vsel %vm772, 0, %v718
        %v784 = vsel %vm772, 0, %v725
        %v785 = vsel %vm772, 0, %v732
        %v786 = vsel %vm772, 0, %v739
        %v787 = vsel %vm772, 0, %v746
        %v788 = vsel %vm772, 0, %v753
        %v789 = vrot.slane %v646, 1
        %v790 = vor.u32 %v643, %v789
        %v791 = vrot.slane %v653, 1
        %v792 = vor.u32 %v650, %v791
        %v793 = vrot.slane %v660, 1
        %v794 = vor.u32 %v657, %v793
        %v795 = vrot.slane %v667, 1
        %v796 = vor.u32 %v664, %v795
        %v797 = vrot.slane %v674, 1
        %v798 = vor.u32 %v671, %v797
        %v799 = vrot.slane %v681, 1
        %v800 = vor.u32 %v678, %v799
        %v801 = vrot.slane %v688, 1
        %v802 = vor.u32 %v685, %v801
        %v803 = vrot.slane %v695, 1
        %v804 = vor.u32 %v692, %v803
        %v805 = vrot.slane %v702, 1
        %v806 = vor.u32 %v699, %v805
        %v807 = vrot.slane %v709, 1
        %v808 = vor.u32 %v706, %v807
        %v809 = vrot.slane %v716, 1
        %v810 = vor.u32 %v713, %v809
        %v811 = vrot.slane %v723, 1
        %v812 = vor.u32 %v720, %v811
        %v813 = vrot.slane %v730, 1
        %v814 = vor.u32 %v727, %v813
        %v815 = vrot.slane %v737, 1
        %v816 = vor.u32 %v734, %v815
        %v817 = vrot.slane %v744, 1
        %v818 = vor.u32 %v741, %v817
        %v819 = vrot.slane %v751, 1
        %v820 = vor.u32 %v748, %v819
        %vm837 = vcmask 1047552
        %vm838 = vsmask.f32 7424
        %vm839 = vmand %vm837, %vm838
        %v840 = vsel %vm839, %v790, 0
        %v841 = vsel %vm839, %v792, 0
        %v842 = vsel %vm839, %v794, 0
        %v843 = vsel %vm839, %v796, 0
        %v844 = vsel %vm839, %v798, 0
        %v845 = vsel %vm839, %v800, 0
        %v846 = vsel %vm839, %v802, 0
        %v847 = vsel %vm839, %v804, 0
        %v848 = vsel %vm839, %v806, 0
        %v849 = vsel %vm839, %v808, 0
        %v850 = vsel %vm839, %v810, 0
        %v851 = vsel %vm839, %v812, 0
        %v852 = vsel %vm839, %v814, 0
        %v853 = vsel %vm839, %v816, 0
        %v854 = vsel %vm839, %v818, 0
        %v855 = vsel %vm839, %v820, 0
        %v856 = vld [vmem:[%s3] sm:$0xf]
        %v857 = vld [vmem:[%s3 + $0x4] sm:$0xf]
        %v858 = vld [vmem:[%s3 + $0x8] sm:$0xf]
        %v859 = vld [vmem:[%s3 + $0xc] sm:$0xf]
        %v860 = vld [vmem:[%s3 + $0x10] sm:$0x3]
        %862 = vrot.lane.b32.xlu0 0, 4
        %v863 = vpop.permute.xlu0 %862
        %864 = vrot.lane.b32.xlu0 %v626, 4
        %v865 = vpop.permute.xlu0 %864
        %866 = vrot.lane.b32.xlu0 %v627, 4
        %v867 = vpop.permute.xlu0 %866
        %868 = vrot.lane.b32.xlu0 %v628, 4
        %v869 = vpop.permute.xlu0 %868
        %870 = vrot.lane.b32.xlu0 %v629, 4
        %v871 = vpop.permute.xlu0 %870
        %872 = vrot.lane.b32.xlu0 %v630, 4
        %v873 = vpop.permute.xlu0 %872
        %874 = vrot.lane.b32.xlu0 %v631, 4
        %v875 = vpop.permute.xlu0 %874
        %876 = vrot.lane.b32.xlu0 %v632, 4
        %v877 = vpop.permute.xlu0 %876
        %878 = vrot.lane.b32.xlu0 %v633, 4
        %v879 = vpop.permute.xlu0 %878
        %880 = vrot.lane.b32.xlu0 %v634, 4
        %v881 = vpop.permute.xlu0 %880
        %882 = vrot.lane.b32.xlu0 %v635, 4
        %v883 = vpop.permute.xlu0 %882
        %884 = vrot.lane.b32.xlu0 %v636, 4
        %v885 = vpop.permute.xlu0 %884
        %886 = vrot.lane.b32.xlu0 %v637, 4
        %v887 = vpop.permute.xlu0 %886
        %888 = vrot.lane.b32.xlu0 %v638, 4
        %v889 = vpop.permute.xlu0 %888
        %890 = vrot.lane.b32.xlu0 %v639, 4
        %v891 = vpop.permute.xlu0 %890
        %892 = vrot.lane.b32.xlu0 %v640, 4
        %v893 = vpop.permute.xlu0 %892
        %909 = vrot.lane.b32.xlu0 0, 8
        %v910 = vpop.permute.xlu0 %909
        %911 = vrot.lane.b32.xlu0 %v840, 8
        %v912 = vpop.permute.xlu0 %911
        %913 = vrot.lane.b32.xlu0 %v841, 8
        %v914 = vpop.permute.xlu0 %913
        %915 = vrot.lane.b32.xlu0 %v842, 8
        %v916 = vpop.permute.xlu0 %915
        %917 = vrot.lane.b32.xlu0 %v843, 8
        %v918 = vpop.permute.xlu0 %917
        %919 = vrot.lane.b32.xlu0 %v844, 8
        %v920 = vpop.permute.xlu0 %919
        %921 = vrot.lane.b32.xlu0 %v845, 8
        %v922 = vpop.permute.xlu0 %921
        %923 = vrot.lane.b32.xlu0 %v846, 8
        %v924 = vpop.permute.xlu0 %923
        %925 = vrot.lane.b32.xlu0 %v847, 8
        %v926 = vpop.permute.xlu0 %925
        %927 = vrot.lane.b32.xlu0 %v848, 8
        %v928 = vpop.permute.xlu0 %927
        %929 = vrot.lane.b32.xlu0 %v849, 8
        %v930 = vpop.permute.xlu0 %929
        %931 = vrot.lane.b32.xlu0 %v850, 8
        %v932 = vpop.permute.xlu0 %931
        %933 = vrot.lane.b32.xlu0 %v851, 8
        %v934 = vpop.permute.xlu0 %933
        %935 = vrot.lane.b32.xlu0 %v852, 8
        %v936 = vpop.permute.xlu0 %935
        %937 = vrot.lane.b32.xlu0 %v853, 8
        %v938 = vpop.permute.xlu0 %937
        %939 = vrot.lane.b32.xlu0 %v854, 8
        %v940 = vpop.permute.xlu0 %939
        %957 = vrot.lane.b32.xlu0 %v773, 12
        %v958 = vpop.permute.xlu0 %957
        %959 = vrot.lane.b32.xlu0 %v774, 12
        %v960 = vpop.permute.xlu0 %959
        %961 = vrot.lane.b32.xlu0 %v775, 12
        %v962 = vpop.permute.xlu0 %961
        %963 = vrot.lane.b32.xlu0 %v776, 12
        %v964 = vpop.permute.xlu0 %963
        %965 = vrot.lane.b32.xlu0 %v777, 12
        %v966 = vpop.permute.xlu0 %965
        %967 = vrot.lane.b32.xlu0 %v778, 12
        %v968 = vpop.permute.xlu0 %967
        %969 = vrot.lane.b32.xlu0 %v779, 12
        %v970 = vpop.permute.xlu0 %969
        %971 = vrot.lane.b32.xlu0 %v780, 12
        %v972 = vpop.permute.xlu0 %971
        %973 = vrot.lane.b32.xlu0 %v781, 12
        %v974 = vpop.permute.xlu0 %973
        %975 = vrot.lane.b32.xlu0 %v782, 12
        %v976 = vpop.permute.xlu0 %975
        %977 = vrot.lane.b32.xlu0 %v783, 12
        %v978 = vpop.permute.xlu0 %977
        %979 = vrot.lane.b32.xlu0 %v784, 12
        %v980 = vpop.permute.xlu0 %979
        %981 = vrot.lane.b32.xlu0 %v785, 12
        %v982 = vpop.permute.xlu0 %981
        %983 = vrot.lane.b32.xlu0 %v786, 12
        %v984 = vpop.permute.xlu0 %983
        %985 = vrot.lane.b32.xlu0 %v787, 12
        %v986 = vpop.permute.xlu0 %985
        %987 = vrot.lane.b32.xlu0 %v788, 12
        %v988 = vpop.permute.xlu0 %987
        %989 = vrot.lane.b32.xlu0 %v626, 16
        %v990 = vpop.permute.xlu0 %989
        %991 = vrot.lane.b32.xlu0 %v627, 16
        %v992 = vpop.permute.xlu0 %991
        %993 = vrot.lane.b32.xlu0 %v628, 16
        %v994 = vpop.permute.xlu0 %993
        %995 = vrot.lane.b32.xlu0 %v629, 16
        %v996 = vpop.permute.xlu0 %995
        %997 = vrot.lane.b32.xlu0 %v630, 16
        %v998 = vpop.permute.xlu0 %997
        %999 = vrot.lane.b32.xlu0 %v631, 16
        %v1000 = vpop.permute.xlu0 %999
        %1001 = vrot.lane.b32.xlu0 %v632, 16
        %v1002 = vpop.permute.xlu0 %1001
        %1003 = vrot.lane.b32.xlu0 %v633, 16
        %v1004 = vpop.permute.xlu0 %1003
        %1005 = vrot.lane.b32.xlu0 %v634, 16
        %v1006 = vpop.permute.xlu0 %1005
        %1007 = vrot.lane.b32.xlu0 %v635, 16
        %v1008 = vpop.permute.xlu0 %1007
        %1009 = vrot.lane.b32.xlu0 %v636, 16
        %v1010 = vpop.permute.xlu0 %1009
        %1011 = vrot.lane.b32.xlu0 %v637, 16
        %v1012 = vpop.permute.xlu0 %1011
        %1013 = vrot.lane.b32.xlu0 %v638, 16
        %v1014 = vpop.permute.xlu0 %1013
        %1015 = vrot.lane.b32.xlu0 %v639, 16
        %v1016 = vpop.permute.xlu0 %1015
        %1017 = vrot.lane.b32.xlu0 %v640, 16
        %v1018 = vpop.permute.xlu0 %1017
        %1019 = vrot.lane.b32.xlu0 %v641, 16
        %v1020 = vpop.permute.xlu0 %1019
        %1022 = vrot.lane.b32.xlu0 %v840, 20
        %v1023 = vpop.permute.xlu0 %1022
        %1024 = vrot.lane.b32.xlu0 %v841, 20
        %v1025 = vpop.permute.xlu0 %1024
        %1026 = vrot.lane.b32.xlu0 %v842, 20
        %v1027 = vpop.permute.xlu0 %1026
        %1028 = vrot.lane.b32.xlu0 %v843, 20
        %v1029 = vpop.permute.xlu0 %1028
        %1030 = vrot.lane.b32.xlu0 %v844, 20
        %v1031 = vpop.permute.xlu0 %1030
        %1032 = vrot.lane.b32.xlu0 %v845, 20
        %v1033 = vpop.permute.xlu0 %1032
        %1034 = vrot.lane.b32.xlu0 %v846, 20
        %v1035 = vpop.permute.xlu0 %1034
        %1036 = vrot.lane.b32.xlu0 %v847, 20
        %v1037 = vpop.permute.xlu0 %1036
        %1038 = vrot.lane.b32.xlu0 %v848, 20
        %v1039 = vpop.permute.xlu0 %1038
        %1040 = vrot.lane.b32.xlu0 %v849, 20
        %v1041 = vpop.permute.xlu0 %1040
        %1042 = vrot.lane.b32.xlu0 %v850, 20
        %v1043 = vpop.permute.xlu0 %1042
        %1044 = vrot.lane.b32.xlu0 %v851, 20
        %v1045 = vpop.permute.xlu0 %1044
        %1046 = vrot.lane.b32.xlu0 %v852, 20
        %v1047 = vpop.permute.xlu0 %1046
        %1048 = vrot.lane.b32.xlu0 %v853, 20
        %v1049 = vpop.permute.xlu0 %1048
        %1050 = vrot.lane.b32.xlu0 %v854, 20
        %v1051 = vpop.permute.xlu0 %1050
        %1052 = vrot.lane.b32.xlu0 %v855, 20
        %v1053 = vpop.permute.xlu0 %1052
        %1054 = vrot.lane.b32.xlu0 %v774, 24
        %v1055 = vpop.permute.xlu0 %1054
        %1056 = vrot.lane.b32.xlu0 %v775, 24
        %v1057 = vpop.permute.xlu0 %1056
        %1058 = vrot.lane.b32.xlu0 %v776, 24
        %v1059 = vpop.permute.xlu0 %1058
        %1060 = vrot.lane.b32.xlu0 %v777, 24
        %v1061 = vpop.permute.xlu0 %1060
        %1062 = vrot.lane.b32.xlu0 %v778, 24
        %v1063 = vpop.permute.xlu0 %1062
        %1064 = vrot.lane.b32.xlu0 %v779, 24
        %v1065 = vpop.permute.xlu0 %1064
        %1066 = vrot.lane.b32.xlu0 %v780, 24
        %v1067 = vpop.permute.xlu0 %1066
        %1068 = vrot.lane.b32.xlu0 %v781, 24
        %v1069 = vpop.permute.xlu0 %1068
        %1070 = vrot.lane.b32.xlu0 %v782, 24
        %v1071 = vpop.permute.xlu0 %1070
        %1072 = vrot.lane.b32.xlu0 %v783, 24
        %v1073 = vpop.permute.xlu0 %1072
        %1074 = vrot.lane.b32.xlu0 %v784, 24
        %v1075 = vpop.permute.xlu0 %1074
        %1076 = vrot.lane.b32.xlu0 %v785, 24
        %v1077 = vpop.permute.xlu0 %1076
        %1078 = vrot.lane.b32.xlu0 %v786, 24
        %v1079 = vpop.permute.xlu0 %1078
        %1080 = vrot.lane.b32.xlu0 %v787, 24
        %v1081 = vpop.permute.xlu0 %1080
        %1082 = vrot.lane.b32.xlu0 %v788, 24
        %v1083 = vpop.permute.xlu0 %1082
        %1084 = vrot.lane.b32.xlu0 0, 24
        %v1085 = vpop.permute.xlu0 %1084
        %v1086 = vunpack.c.l.b16 0
        %v1087 = vpack.c.b16 %v1086, %v1086
        %1088 = vrot.lane.b32.xlu0 %v627, 28
        %v1089 = vpop.permute.xlu0 %1088
        %1090 = vrot.lane.b32.xlu0 %v628, 28
        %v1091 = vpop.permute.xlu0 %1090
        %1092 = vrot.lane.b32.xlu0 %v629, 28
        %v1093 = vpop.permute.xlu0 %1092
        %1094 = vrot.lane.b32.xlu0 %v630, 28
        %v1095 = vpop.permute.xlu0 %1094
        %1096 = vrot.lane.b32.xlu0 %v631, 28
        %v1097 = vpop.permute.xlu0 %1096
        %1098 = vrot.lane.b32.xlu0 %v632, 28
        %v1099 = vpop.permute.xlu0 %1098
        %1100 = vrot.lane.b32.xlu0 %v633, 28
        %v1101 = vpop.permute.xlu0 %1100
        %1102 = vrot.lane.b32.xlu0 %v634, 28
        %v1103 = vpop.permute.xlu0 %1102
        %1104 = vrot.lane.b32.xlu0 %v635, 28
        %v1105 = vpop.permute.xlu0 %1104
        %1106 = vrot.lane.b32.xlu0 %v636, 28
        %v1107 = vpop.permute.xlu0 %1106
        %1108 = vrot.lane.b32.xlu0 %v637, 28
        %v1109 = vpop.permute.xlu0 %1108
        %1110 = vrot.lane.b32.xlu0 %v638, 28
        %v1111 = vpop.permute.xlu0 %1110
        %1112 = vrot.lane.b32.xlu0 %v639, 28
        %v1113 = vpop.permute.xlu0 %1112
        %1114 = vrot.lane.b32.xlu0 %v640, 28
        %v1115 = vpop.permute.xlu0 %1114
        %1116 = vrot.lane.b32.xlu0 %v641, 28
        %v1117 = vpop.permute.xlu0 %1116
        %1118 = vrot.lane.b32.xlu0 %v1087, 28
        %v1119 = vpop.permute.xlu0 %1118
        %1120 = vrot.lane.b32.xlu0 %v841, 32
        %v1121 = vpop.permute.xlu0 %1120
        %1122 = vrot.lane.b32.xlu0 %v842, 32
        %v1123 = vpop.permute.xlu0 %1122
        %1124 = vrot.lane.b32.xlu0 %v843, 32
        %v1125 = vpop.permute.xlu0 %1124
        %1126 = vrot.lane.b32.xlu0 %v844, 32
        %v1127 = vpop.permute.xlu0 %1126
        %1128 = vrot.lane.b32.xlu0 %v845, 32
        %v1129 = vpop.permute.xlu0 %1128
        %1130 = vrot.lane.b32.xlu0 %v846, 32
        %v1131 = vpop.permute.xlu0 %1130
        %1132 = vrot.lane.b32.xlu0 %v847, 32
        %v1133 = vpop.permute.xlu0 %1132
        %1134 = vrot.lane.b32.xlu0 %v848, 32
        %v1135 = vpop.permute.xlu0 %1134
        %1136 = vrot.lane.b32.xlu0 %v849, 32
        %v1137 = vpop.permute.xlu0 %1136
        %1138 = vrot.lane.b32.xlu0 %v850, 32
        %v1139 = vpop.permute.xlu0 %1138
        %1140 = vrot.lane.b32.xlu0 %v851, 32
        %v1141 = vpop.permute.xlu0 %1140
        %1142 = vrot.lane.b32.xlu0 %v852, 32
        %v1143 = vpop.permute.xlu0 %1142
        %1144 = vrot.lane.b32.xlu0 %v853, 32
        %v1145 = vpop.permute.xlu0 %1144
        %1146 = vrot.lane.b32.xlu0 %v854, 32
        %v1147 = vpop.permute.xlu0 %1146
        %1148 = vrot.lane.b32.xlu0 %v855, 32
        %v1149 = vpop.permute.xlu0 %1148
        %1150 = vrot.lane.b32.xlu0 0, 32
        %v1151 = vpop.permute.xlu0 %1150
        %vm1152 = vcmask 31744
        %v1155 = vsel %vm1152, 0, %v863
        %v1158 = vsel %vm1152, %v773, %v865
        %v1161 = vsel %vm1152, %v774, %v867
        %v1164 = vsel %vm1152, %v775, %v869
        %v1167 = vsel %vm1152, %v776, %v871
        %v1170 = vsel %vm1152, %v777, %v873
        %v1173 = vsel %vm1152, %v778, %v875
        %v1176 = vsel %vm1152, %v779, %v877
        %v1179 = vsel %vm1152, %v780, %v879
        %v1182 = vsel %vm1152, %v781, %v881
        %v1185 = vsel %vm1152, %v782, %v883
        %v1188 = vsel %vm1152, %v783, %v885
        %v1191 = vsel %vm1152, %v784, %v887
        %v1194 = vsel %vm1152, %v785, %v889
        %v1197 = vsel %vm1152, %v786, %v891
        %v1200 = vsel %vm1152, %v787, %v893
        %vm1201 = vcmask 64512
        %v1203 = vsel %vm1201, %v1155, %v910
        %v1205 = vsel %vm1201, %v1158, %v912
        %v1207 = vsel %vm1201, %v1161, %v914
        %v1209 = vsel %vm1201, %v1164, %v916
        %v1211 = vsel %vm1201, %v1167, %v918
        %v1213 = vsel %vm1201, %v1170, %v920
        %v1215 = vsel %vm1201, %v1173, %v922
        %v1217 = vsel %vm1201, %v1176, %v924
        %v1219 = vsel %vm1201, %v1179, %v926
        %v1221 = vsel %vm1201, %v1182, %v928
        %v1223 = vsel %vm1201, %v1185, %v930
        %v1225 = vsel %vm1201, %v1188, %v932
        %v1227 = vsel %vm1201, %v1191, %v934
        %v1229 = vsel %vm1201, %v1194, %v936
        %v1231 = vsel %vm1201, %v1197, %v938
        %v1233 = vsel %vm1201, %v1200, %v940
        %vm1234 = vcmask 97280
        %v1236 = vsel %vm1234, %v1203, %v958
        %v1238 = vsel %vm1234, %v1205, %v960
        %v1240 = vsel %vm1234, %v1207, %v962
        %v1242 = vsel %vm1234, %v1209, %v964
        %v1244 = vsel %vm1234, %v1211, %v966
        %v1246 = vsel %vm1234, %v1213, %v968
        %v1248 = vsel %vm1234, %v1215, %v970
        %v1250 = vsel %vm1234, %v1217, %v972
        %v1252 = vsel %vm1234, %v1219, %v974
        %v1254 = vsel %vm1234, %v1221, %v976
        %v1256 = vsel %vm1234, %v1223, %v978
        %v1258 = vsel %vm1234, %v1225, %v980
        %v1260 = vsel %vm1234, %v1227, %v982
        %v1262 = vsel %vm1234, %v1229, %v984
        %v1264 = vsel %vm1234, %v1231, %v986
        %v1266 = vsel %vm1234, %v1233, %v988
        %v1268 = vsel %vm360, %v1236, %v990
        %v1270 = vsel %vm360, %v1238, %v992
        %v1272 = vsel %vm360, %v1240, %v994
        %v1274 = vsel %vm360, %v1242, %v996
        %v1276 = vsel %vm360, %v1244, %v998
        %v1278 = vsel %vm360, %v1246, %v1000
        %v1280 = vsel %vm360, %v1248, %v1002
        %v1282 = vsel %vm360, %v1250, %v1004
        %v1284 = vsel %vm360, %v1252, %v1006
        %v1286 = vsel %vm360, %v1254, %v1008
        %v1288 = vsel %vm360, %v1256, %v1010
        %v1290 = vsel %vm360, %v1258, %v1012
        %v1292 = vsel %vm360, %v1260, %v1014
        %v1294 = vsel %vm360, %v1262, %v1016
        %v1296 = vsel %vm360, %v1264, %v1018
        %v1298 = vsel %vm360, %v1266, %v1020
        %vm1299 = vcmask 162816
        %v1301 = vsel %vm1299, %v1268, %v1023
        %v1303 = vsel %vm1299, %v1270, %v1025
        %v1305 = vsel %vm1299, %v1272, %v1027
        %v1307 = vsel %vm1299, %v1274, %v1029
        %v1309 = vsel %vm1299, %v1276, %v1031
        %v1311 = vsel %vm1299, %v1278, %v1033
        %v1313 = vsel %vm1299, %v1280, %v1035
        %v1315 = vsel %vm1299, %v1282, %v1037
        %v1317 = vsel %vm1299, %v1284, %v1039
        %v1319 = vsel %vm1299, %v1286, %v1041
        %v1321 = vsel %vm1299, %v1288, %v1043
        %v1323 = vsel %vm1299, %v1290, %v1045
        %v1325 = vsel %vm1299, %v1292, %v1047
        %v1327 = vsel %vm1299, %v1294, %v1049
        %v1329 = vsel %vm1299, %v1296, %v1051
        %v1331 = vsel %vm1299, %v1298, %v1053
        %vm1332 = vcmask 195584
        %v1334 = vsel %vm1332, %v1301, %v1055
        %v1336 = vsel %vm1332, %v1303, %v1057
        %v1338 = vsel %vm1332, %v1305, %v1059
        %v1340 = vsel %vm1332, %v1307, %v1061
        %v1342 = vsel %vm1332, %v1309, %v1063
        %v1344 = vsel %vm1332, %v1311, %v1065
        %v1346 = vsel %vm1332, %v1313, %v1067
        %v1348 = vsel %vm1332, %v1315, %v1069
        %v1350 = vsel %vm1332, %v1317, %v1071
        %v1352 = vsel %vm1332, %v1319, %v1073
        %v1354 = vsel %vm1332, %v1321, %v1075
        %v1356 = vsel %vm1332, %v1323, %v1077
        %v1358 = vsel %vm1332, %v1325, %v1079
        %v1360 = vsel %vm1332, %v1327, %v1081
        %v1362 = vsel %vm1332, %v1329, %v1083
        %v1364 = vsel %vm1332, %v1331, %v1085
        %vm1365 = vcmask 228352
        %v1367 = vsel %vm1365, %v1334, %v1089
        %v1369 = vsel %vm1365, %v1336, %v1091
        %v1371 = vsel %vm1365, %v1338, %v1093
        %v1373 = vsel %vm1365, %v1340, %v1095
        %v1375 = vsel %vm1365, %v1342, %v1097
        %v1377 = vsel %vm1365, %v1344, %v1099
        %v1379 = vsel %vm1365, %v1346, %v1101
        %v1381 = vsel %vm1365, %v1348, %v1103
        %v1383 = vsel %vm1365, %v1350, %v1105
        %v1385 = vsel %vm1365, %v1352, %v1107
        %v1387 = vsel %vm1365, %v1354, %v1109
        %v1389 = vsel %vm1365, %v1356, %v1111
        %v1391 = vsel %vm1365, %v1358, %v1113
        %v1393 = vsel %vm1365, %v1360, %v1115
        %v1395 = vsel %vm1365, %v1362, %v1117
        %v1397 = vsel %vm1365, %v1364, %v1119
        %vm1398 = vcmask 261120
        %v1400 = vsel %vm1398, %v1367, %v1121
        %v1402 = vsel %vm1398, %v1369, %v1123
        %v1404 = vsel %vm1398, %v1371, %v1125
        %v1406 = vsel %vm1398, %v1373, %v1127
        %v1408 = vsel %vm1398, %v1375, %v1129
        %v1410 = vsel %vm1398, %v1377, %v1131
        %v1412 = vsel %vm1398, %v1379, %v1133
        %v1414 = vsel %vm1398, %v1381, %v1135
        %v1416 = vsel %vm1398, %v1383, %v1137
        %v1418 = vsel %vm1398, %v1385, %v1139
        %v1420 = vsel %vm1398, %v1387, %v1141
        %v1422 = vsel %vm1398, %v1389, %v1143
        %v1424 = vsel %vm1398, %v1391, %v1145
        %v1426 = vsel %vm1398, %v1393, %v1147
        %v1428 = vsel %vm1398, %v1395, %v1149
        %v1430 = vsel %vm1398, %v1397, %v1151
        %v1431 = vld [vmem:[%s4] sm:$0x1]
        %v1433 = vperm.slane %v1431, 0
        %v1440 = vunpack.c.l.b16 %v856
        %v1441 = vunpack.c.l.b16 %v857
        %v1442 = vunpack.c.l.b16 %v858
        %v1443 = vunpack.c.l.b16 %v859
        %v1444 = vunpack.c.l.b16 %v860
        %v1445 = vpack.c.b16 %v1441, %v1440
        %v1446 = vpack.c.b16 %v1443, %v1442
        %v1447 = vpack.c.b16 %v1444, %v1444
        %vm1450 = vcmask 293888
        %v1451 = vsel %vm1450, %v1400, 0
        %v1453 = vsel %vm1450, %v1402, 0
        %v1455 = vsel %vm1450, %v1404, 0
        %v1457 = vsel %vm1450, %v1406, 0
        %v1459 = vsel %vm1450, %v1408, 0
        %v1461 = vsel %vm1450, %v1410, 0
        %v1463 = vsel %vm1450, %v1412, 0
        %v1465 = vsel %vm1450, %v1414, 0
        %v1467 = vsel %vm1450, %v1416, 0
        %v1469 = vsel %vm1450, %v1418, 0
        %v1471 = vsel %vm1450, %v1420, 0
        %v1473 = vsel %vm1450, %v1422, 0
        %v1475 = vsel %vm1450, %v1424, 0
        %v1477 = vsel %vm1450, %v1426, 0
        %v1479 = vsel %vm1450, %v1428, 0
        %v1481 = vsel %vm1450, %v1430, 0
        %vm1483 = vcmask 1041408
        %v1485 = vsel %vm1483, %v1447, 0
        %1487 = vmatpush.bf16.msra.mxu0 0
        %1488 = vmatpush.bf16.msra.mxu0 0
        %1489 = vmatpush.bf16.msra.mxu0 0
        %1490 = vmatpush.bf16.msra.mxu0 0
        %1491 = vmatpush.bf16.msra.mxu0 0
        %1492 = vmatpush.bf16.msra.mxu0 %v1485
        %1493 = vmatpush.bf16.msra.mxu0 %v1446
        %1494 = vmatpush.bf16.msra.mxu0 %v1445
        %1495 = vmatmul.bf16.gmra.mxu0 %v1451
        %v1496 = vpop.f32.mrf.mxu0
        %v1497 = vadd.f32 %v1433, %v1496
        %v1498 = vpop.f32.mrf.mxu0
        %v1499 = vadd.f32 %v1433, %v1498
        %1500 = vmatmul.bf16.gmra.mxu0 %v1453
        %v1501 = vpop.f32.mrf.mxu0
        %v1502 = vadd.f32 %v1433, %v1501
        %v1503 = vpop.f32.mrf.mxu0
        %v1504 = vadd.f32 %v1433, %v1503
        %1505 = vmatmul.bf16.gmra.mxu0 %v1455
        %v1506 = vpop.f32.mrf.mxu0
        %v1507 = vadd.f32 %v1433, %v1506
        %v1508 = vpop.f32.mrf.mxu0
        %v1509 = vadd.f32 %v1433, %v1508
        %1510 = vmatmul.bf16.gmra.mxu0 %v1457
        %v1511 = vpop.f32.mrf.mxu0
        %v1512 = vadd.f32 %v1433, %v1511
        %v1513 = vpop.f32.mrf.mxu0
        %v1514 = vadd.f32 %v1433, %v1513
        %1515 = vmatmul.bf16.gmra.mxu0 %v1459
        %v1516 = vpop.f32.mrf.mxu0
        %v1517 = vadd.f32 %v1433, %v1516
        %v1518 = vpop.f32.mrf.mxu0
        %v1519 = vadd.f32 %v1433, %v1518
        %1520 = vmatmul.bf16.gmra.mxu0 %v1461
        %v1521 = vpop.f32.mrf.mxu0
        %v1522 = vadd.f32 %v1433, %v1521
        %v1523 = vpop.f32.mrf.mxu0
        %v1524 = vadd.f32 %v1433, %v1523
        %1525 = vmatmul.bf16.gmra.mxu0 %v1463
        %v1526 = vpop.f32.mrf.mxu0
        %v1527 = vadd.f32 %v1433, %v1526
        %v1528 = vpop.f32.mrf.mxu0
        %v1529 = vadd.f32 %v1433, %v1528
        %1530 = vmatmul.bf16.gmra.mxu0 %v1465
        %v1531 = vpop.f32.mrf.mxu0
        %v1532 = vadd.f32 %v1433, %v1531
        %v1533 = vpop.f32.mrf.mxu0
        %v1534 = vadd.f32 %v1433, %v1533
        %1535 = vmatmul.bf16.gmra.mxu0 %v1467
        %v1536 = vpop.f32.mrf.mxu0
        %v1537 = vadd.f32 %v1433, %v1536
        %v1538 = vpop.f32.mrf.mxu0
        %v1539 = vadd.f32 %v1433, %v1538
        %1540 = vmatmul.bf16.gmra.mxu0 %v1469
        %v1541 = vpop.f32.mrf.mxu0
        %v1542 = vadd.f32 %v1433, %v1541
        %v1543 = vpop.f32.mrf.mxu0
        %v1544 = vadd.f32 %v1433, %v1543
        %1545 = vmatmul.bf16.gmra.mxu0 %v1471
        %v1546 = vpop.f32.mrf.mxu0
        %v1547 = vadd.f32 %v1433, %v1546
        %v1548 = vpop.f32.mrf.mxu0
        %v1549 = vadd.f32 %v1433, %v1548
        %1550 = vmatmul.bf16.gmra.mxu0 %v1473
        %v1551 = vpop.f32.mrf.mxu0
        %v1552 = vadd.f32 %v1433, %v1551
        %v1553 = vpop.f32.mrf.mxu0
        %v1554 = vadd.f32 %v1433, %v1553
        %1555 = vmatmul.bf16.gmra.mxu0 %v1475
        %v1556 = vpop.f32.mrf.mxu0
        %v1557 = vadd.f32 %v1433, %v1556
        %v1558 = vpop.f32.mrf.mxu0
        %v1559 = vadd.f32 %v1433, %v1558
        %1560 = vmatmul.bf16.gmra.mxu0 %v1477
        %v1561 = vpop.f32.mrf.mxu0
        %v1562 = vadd.f32 %v1433, %v1561
        %v1563 = vpop.f32.mrf.mxu0
        %v1564 = vadd.f32 %v1433, %v1563
        %1565 = vmatmul.bf16.gmra.mxu0 %v1479
        %v1566 = vpop.f32.mrf.mxu0
        %v1567 = vadd.f32 %v1433, %v1566
        %v1568 = vpop.f32.mrf.mxu0
        %v1569 = vadd.f32 %v1433, %v1568
        %1570 = vmatmul.bf16.gmra.mxu0 %v1481
        %v1571 = vpop.f32.mrf.mxu0
        %v1572 = vadd.f32 %v1433, %v1571
        %v1573 = vpop.f32.mrf.mxu0
        %v1574 = vadd.f32 %v1433, %v1573
        %1575 = vdwg.mxu0
        %v1576 = vmax.f32 %v1497, 0.0
        %v1577 = vmax.f32 %v1499, 0.0
        %v1578 = vmax.f32 %v1502, 0.0
        %v1579 = vmax.f32 %v1504, 0.0
        %v1580 = vmax.f32 %v1507, 0.0
        %v1581 = vmax.f32 %v1509, 0.0
        %v1582 = vmax.f32 %v1512, 0.0
        %v1583 = vmax.f32 %v1514, 0.0
        %v1584 = vmax.f32 %v1517, 0.0
        %v1585 = vmax.f32 %v1519, 0.0
        %v1586 = vmax.f32 %v1522, 0.0
        %v1587 = vmax.f32 %v1524, 0.0
        %v1588 = vmax.f32 %v1527, 0.0
        %v1589 = vmax.f32 %v1529, 0.0
        %v1590 = vmax.f32 %v1532, 0.0
        %v1591 = vmax.f32 %v1534, 0.0
        %v1592 = vmax.f32 %v1537, 0.0
        %v1593 = vmax.f32 %v1539, 0.0
        %v1594 = vmax.f32 %v1542, 0.0
        %v1595 = vmax.f32 %v1544, 0.0
        %v1596 = vmax.f32 %v1547, 0.0
        %v1597 = vmax.f32 %v1549, 0.0
        %v1598 = vmax.f32 %v1552, 0.0
        %v1599 = vmax.f32 %v1554, 0.0
        %v1600 = vmax.f32 %v1557, 0.0
        %v1601 = vmax.f32 %v1559, 0.0
        %v1602 = vmax.f32 %v1562, 0.0
        %v1603 = vmax.f32 %v1564, 0.0
        %v1604 = vmax.f32 %v1567, 0.0
        %v1605 = vmax.f32 %v1569, 0.0
        %v1606 = vmax.f32 %v1572, 0.0
        %v1607 = vmax.f32 %v1574, 0.0
        %v1608 = vpack.c.bf16 %v1577, %v1576
        %v1609 = vpack.c.bf16 %v1579, %v1578
        %v1610 = vpack.c.bf16 %v1581, %v1580
        %v1611 = vpack.c.bf16 %v1583, %v1582
        %v1612 = vpack.c.bf16 %v1585, %v1584
        %v1613 = vpack.c.bf16 %v1587, %v1586
        %v1614 = vpack.c.bf16 %v1589, %v1588
        %v1615 = vpack.c.bf16 %v1591, %v1590
        %v1616 = vpack.c.bf16 %v1593, %v1592
        %v1617 = vpack.c.bf16 %v1595, %v1594
        %v1618 = vpack.c.bf16 %v1597, %v1596
        %v1619 = vpack.c.bf16 %v1599, %v1598
        %v1620 = vpack.c.bf16 %v1601, %v1600
        %v1621 = vpack.c.bf16 %v1603, %v1602
        %v1622 = vpack.c.bf16 %v1605, %v1604
        %v1623 = vpack.c.bf16 %v1607, %v1606
        %v1624 = vld [vmem:[%s5] sm:$0x3]
        %v1625 = vld [vmem:[%s6] sm:$0x1]
        %v1627 = vperm.slane %v1625, 0
        %v1630 = vsel %vm1152, %v1608, 0
        %v1633 = vsel %vm1152, %v1609, 0
        %v1636 = vsel %vm1152, %v1610, 0
        %v1639 = vsel %vm1152, %v1611, 0
        %v1642 = vsel %vm1152, %v1612, 0
        %v1645 = vsel %vm1152, %v1613, 0
        %v1648 = vsel %vm1152, %v1614, 0
        %v1651 = vsel %vm1152, %v1615, 0
        %v1654 = vsel %vm1152, %v1616, 0
        %v1657 = vsel %vm1152, %v1617, 0
        %v1660 = vsel %vm1152, %v1618, 0
        %v1663 = vsel %vm1152, %v1619, 0
        %v1666 = vsel %vm1152, %v1620, 0
        %v1669 = vsel %vm1152, %v1621, 0
        %v1672 = vsel %vm1152, %v1622, 0
        %v1675 = vsel %vm1152, %v1623, 0
        %v1678 = vsel %vm1483, %v1624, 0
        %1680 = vmatpush.bf16.msra.mxu0 0
        %1681 = vmatpush.bf16.msra.mxu0 0
        %1682 = vmatpush.bf16.msra.mxu0 0
        %1683 = vmatpush.bf16.msra.mxu0 0
        %1684 = vmatpush.bf16.msra.mxu0 0
        %1685 = vmatpush.bf16.msra.mxu0 0
        %1686 = vmatpush.bf16.msra.mxu0 0
        %1687 = vmatpush.bf16.msra.mxu0 %v1678
        %1688 = vmatmul.bf16.gmra.mxu0 %v1630
        %v1689 = vpop.f32.mrf.mxu0
        %v1690 = vadd.f32 %v1627, %v1689
        %v1691 = vpop.f32.mrf.mxu0
        %v1692 = vadd.f32 %v1627, %v1691
        %1693 = vmatmul.bf16.gmra.mxu0 %v1633
        %v1694 = vpop.f32.mrf.mxu0
        %v1695 = vadd.f32 %v1627, %v1694
        %v1696 = vpop.f32.mrf.mxu0
        %v1697 = vadd.f32 %v1627, %v1696
        %1698 = vmatmul.bf16.gmra.mxu0 %v1636
        %v1699 = vpop.f32.mrf.mxu0
        %v1700 = vadd.f32 %v1627, %v1699
        %v1701 = vpop.f32.mrf.mxu0
        %v1702 = vadd.f32 %v1627, %v1701
        %1703 = vmatmul.bf16.gmra.mxu0 %v1639
        %v1704 = vpop.f32.mrf.mxu0
        %v1705 = vadd.f32 %v1627, %v1704
        %v1706 = vpop.f32.mrf.mxu0
        %v1707 = vadd.f32 %v1627, %v1706
        %1708 = vmatmul.bf16.gmra.mxu0 %v1642
        %v1709 = vpop.f32.mrf.mxu0
        %v1710 = vadd.f32 %v1627, %v1709
        %v1711 = vpop.f32.mrf.mxu0
        %v1712 = vadd.f32 %v1627, %v1711
        %1713 = vmatmul.bf16.gmra.mxu0 %v1645
        %v1714 = vpop.f32.mrf.mxu0
        %v1715 = vadd.f32 %v1627, %v1714
        %v1716 = vpop.f32.mrf.mxu0
        %v1717 = vadd.f32 %v1627, %v1716
        %1718 = vmatmul.bf16.gmra.mxu0 %v1648
        %v1719 = vpop.f32.mrf.mxu0
        %v1720 = vadd.f32 %v1627, %v1719
        %v1721 = vpop.f32.mrf.mxu0
        %v1722 = vadd.f32 %v1627, %v1721
        %1723 = vmatmul.bf16.gmra.mxu0 %v1651
        %v1724 = vpop.f32.mrf.mxu0
        %v1725 = vadd.f32 %v1627, %v1724
        %v1726 = vpop.f32.mrf.mxu0
        %v1727 = vadd.f32 %v1627, %v1726
        %1728 = vmatmul.bf16.gmra.mxu0 %v1654
        %v1729 = vpop.f32.mrf.mxu0
        %v1730 = vadd.f32 %v1627, %v1729
        %v1731 = vpop.f32.mrf.mxu0
        %v1732 = vadd.f32 %v1627, %v1731
        %1733 = vmatmul.bf16.gmra.mxu0 %v1657
        %v1734 = vpop.f32.mrf.mxu0
        %v1735 = vadd.f32 %v1627, %v1734
        %v1736 = vpop.f32.mrf.mxu0
        %v1737 = vadd.f32 %v1627, %v1736
        %1738 = vmatmul.bf16.gmra.mxu0 %v1660
        %v1739 = vpop.f32.mrf.mxu0
        %v1740 = vadd.f32 %v1627, %v1739
        %v1741 = vpop.f32.mrf.mxu0
        %v1742 = vadd.f32 %v1627, %v1741
        %1743 = vmatmul.bf16.gmra.mxu0 %v1663
        %v1744 = vpop.f32.mrf.mxu0
        %v1745 = vadd.f32 %v1627, %v1744
        %v1746 = vpop.f32.mrf.mxu0
        %v1747 = vadd.f32 %v1627, %v1746
        %1748 = vmatmul.bf16.gmra.mxu0 %v1666
        %v1749 = vpop.f32.mrf.mxu0
        %v1750 = vadd.f32 %v1627, %v1749
        %v1751 = vpop.f32.mrf.mxu0
        %v1752 = vadd.f32 %v1627, %v1751
        %1753 = vmatmul.bf16.gmra.mxu0 %v1669
        %v1754 = vpop.f32.mrf.mxu0
        %v1755 = vadd.f32 %v1627, %v1754
        %v1756 = vpop.f32.mrf.mxu0
        %v1757 = vadd.f32 %v1627, %v1756
        %1758 = vmatmul.bf16.gmra.mxu0 %v1672
        %v1759 = vpop.f32.mrf.mxu0
        %v1760 = vadd.f32 %v1627, %v1759
        %v1761 = vpop.f32.mrf.mxu0
        %v1762 = vadd.f32 %v1627, %v1761
        %1763 = vmatmul.bf16.gmra.mxu0 %v1675
        %v1764 = vpop.f32.mrf.mxu0
        %v1765 = vadd.f32 %v1627, %v1764
        %v1766 = vpop.f32.mrf.mxu0
        %v1767 = vadd.f32 %v1627, %v1766
        %1768 = vdwg.mxu0
        %v1769 = vadd.f32 %v1690, %v300
        %v1770 = vadd.f32 %v1692, %v301
        %v1771 = vadd.f32 %v1695, %v302
        %v1772 = vadd.f32 %v1697, %v303
        %v1773 = vadd.f32 %v1700, %v304
        %v1774 = vadd.f32 %v1702, %v305
        %v1775 = vadd.f32 %v1705, %v306
        %v1776 = vadd.f32 %v1707, %v307
        %v1777 = vadd.f32 %v1710, %v308
        %v1778 = vadd.f32 %v1712, %v309
        %v1779 = vadd.f32 %v1715, %v310
        %v1780 = vadd.f32 %v1717, %v311
        %v1781 = vadd.f32 %v1720, %v312
        %v1782 = vadd.f32 %v1722, %v313
        %v1783 = vadd.f32 %v1725, %v314
        %v1784 = vadd.f32 %v1727, %v315
        %v1785 = vadd.f32 %v1730, %v316
        %v1786 = vadd.f32 %v1732, %v317
        %v1787 = vadd.f32 %v1735, %v318
        %v1788 = vadd.f32 %v1737, %v319
        %v1789 = vadd.f32 %v1740, %v320
        %v1790 = vadd.f32 %v1742, %v321
        %v1791 = vadd.f32 %v1745, %v322
        %v1792 = vadd.f32 %v1747, %v323
        %v1793 = vadd.f32 %v1750, %v324
        %v1794 = vadd.f32 %v1752, %v325
        %v1795 = vadd.f32 %v1755, %v326
        %v1796 = vadd.f32 %v1757, %v327
        %v1797 = vadd.f32 %v1760, %v328
        %v1798 = vadd.f32 %v1762, %v329
        %v1799 = vadd.f32 %v1765, %v330
        %v1800 = vadd.f32 %v1767, %v331
        %v1801 = vmax.f32 %v1769, 0.0
        %v1802 = vmax.f32 %v1770, 0.0
        %v1803 = vmax.f32 %v1771, 0.0
        %v1804 = vmax.f32 %v1772, 0.0
        %v1805 = vmax.f32 %v1773, 0.0
        %v1806 = vmax.f32 %v1774, 0.0
        %v1807 = vmax.f32 %v1775, 0.0
        %v1808 = vmax.f32 %v1776, 0.0
        %v1809 = vmax.f32 %v1777, 0.0
        %v1810 = vmax.f32 %v1778, 0.0
        %v1811 = vmax.f32 %v1779, 0.0
        %v1812 = vmax.f32 %v1780, 0.0
        %v1813 = vmax.f32 %v1781, 0.0
        %v1814 = vmax.f32 %v1782, 0.0
        %v1815 = vmax.f32 %v1783, 0.0
        %v1816 = vmax.f32 %v1784, 0.0
        %v1817 = vmax.f32 %v1785, 0.0
        %v1818 = vmax.f32 %v1786, 0.0
        %v1819 = vmax.f32 %v1787, 0.0
        %v1820 = vmax.f32 %v1788, 0.0
        %v1821 = vmax.f32 %v1789, 0.0
        %v1822 = vmax.f32 %v1790, 0.0
        %v1823 = vmax.f32 %v1791, 0.0
        %v1824 = vmax.f32 %v1792, 0.0
        %v1825 = vmax.f32 %v1793, 0.0
        %v1826 = vmax.f32 %v1794, 0.0
        %v1827 = vmax.f32 %v1795, 0.0
        %v1828 = vmax.f32 %v1796, 0.0
        %v1829 = vmax.f32 %v1797, 0.0
        %v1830 = vmax.f32 %v1798, 0.0
        %v1831 = vmax.f32 %v1799, 0.0
        %v1832 = vmax.f32 %v1800, 0.0
        %1833 = vst.msk [vmem:[%s298] sm:$0xff] %vm360, %v1801
        %1834 = vst.msk [vmem:[%s298 + $0x8] sm:$0xff] %vm360, %v1802
        %1835 = vst.msk [vmem:[%s298 + $0x10] sm:$0xff] %vm360, %v1803
        %1836 = vst.msk [vmem:[%s298 + $0x18] sm:$0xff] %vm360, %v1804
        %1837 = vst.msk [vmem:[%s298 + $0x20] sm:$0xff] %vm360, %v1805
        %1838 = vst.msk [vmem:[%s298 + $0x28] sm:$0xff] %vm360, %v1806
        %1839 = vst.msk [vmem:[%s298 + $0x30] sm:$0xff] %vm360, %v1807
        %1840 = vst.msk [vmem:[%s298 + $0x38] sm:$0xff] %vm360, %v1808
        %1841 = vst.msk [vmem:[%s298 + $0x40] sm:$0xff] %vm360, %v1809
        %1842 = vst.msk [vmem:[%s298 + $0x48] sm:$0xff] %vm360, %v1810
        %1843 = vst.msk [vmem:[%s298 + $0x50] sm:$0xff] %vm360, %v1811
        %1844 = vst.msk [vmem:[%s298 + $0x58] sm:$0xff] %vm360, %v1812
        %1845 = vst.msk [vmem:[%s298 + $0x60] sm:$0xff] %vm360, %v1813
        %1846 = vst.msk [vmem:[%s298 + $0x68] sm:$0xff] %vm360, %v1814
        %1847 = vst.msk [vmem:[%s298 + $0x70] sm:$0xff] %vm360, %v1815
        %1848 = vst.msk [vmem:[%s298 + $0x78] sm:$0xff] %vm360, %v1816
        %1849 = vst.msk [vmem:[%s298 + $0x80] sm:$0xff] %vm360, %v1817
        %1850 = vst.msk [vmem:[%s298 + $0x88] sm:$0xff] %vm360, %v1818
        %1851 = vst.msk [vmem:[%s298 + $0x90] sm:$0xff] %vm360, %v1819
        %1852 = vst.msk [vmem:[%s298 + $0x98] sm:$0xff] %vm360, %v1820
        %1853 = vst.msk [vmem:[%s298 + $0xa0] sm:$0xff] %vm360, %v1821
        %1854 = vst.msk [vmem:[%s298 + $0xa8] sm:$0xff] %vm360, %v1822
        %1855 = vst.msk [vmem:[%s298 + $0xb0] sm:$0xff] %vm360, %v1823
        %1856 = vst.msk [vmem:[%s298 + $0xb8] sm:$0xff] %vm360, %v1824
        %1857 = vst.msk [vmem:[%s298 + $0xc0] sm:$0xff] %vm360, %v1825
        %1858 = vst.msk [vmem:[%s298 + $0xc8] sm:$0xff] %vm360, %v1826
        %1859 = vst.msk [vmem:[%s298 + $0xd0] sm:$0xff] %vm360, %v1827
        %1860 = vst.msk [vmem:[%s298 + $0xd8] sm:$0xff] %vm360, %v1828
        %1861 = vst.msk [vmem:[%s298 + $0xe0] sm:$0xff] %vm360, %v1829
        %1862 = vst.msk [vmem:[%s298 + $0xe8] sm:$0xff] %vm360, %v1830
        %1863 = vst.msk [vmem:[%s298 + $0xf0] sm:$0xff] %vm360, %v1831
        %1864 = vst.msk [vmem:[%s298 + $0xf8] sm:$0xff] %vm360, %v1832
        %s1865 = sand.u32 %s184, 1
        %s1866 = scalar_lea.sflag [#allocation4], %s1865
        %s1867 = sand.u32 %s184, 1
        %s1868 = smul.addr %s1867, 256
        %s1869 = scalar_lea.vmem [#allocation5], %s1868
        // Predicated region
        $region53: #{tpu_custom_call.1} parent=47 // pred_check
          %p1870 = pneg %p194
        $region54: #{tpu_custom_call.1} parent=47 // pred_check_branch
          %1872 = sbr.rel (%p1870) target = $region56
        $region55: #{tpu_custom_call.1} parent=47 // pred_region
          %1874 = vsyncadd %s1866, 0
          %s1875 = smul.addr %s24, 32
          %s1876 = smul.addr %s1875, 8
          %s1877 = scalar_lea.hbm %s7, %s1876
          %s1878 = sshll.u32 %s1869, 4
          %s1879 = int_to_ptr.vmem [resolvable:$true] %s1878
          %s1880 = sshll.u32 %s1877, 4
          %s1881 = int_to_ptr.hbm [resolvable:$true] %s1880
          %1886 = dma.vmem_to_hbm [thread:$0]  %s1879, 4096, %s1881, %s1866, 128, 128, 8
        $region56: #{tpu_custom_call.1} parent=47 // pred_fallthru
          _
      $region48: #{tpu_custom_call.1} parent=5 // pred_fallthru
        _
      %p1887 = scmp.le.s32.totalorder 2, %s19
      // Predicated region
      $region57: #{tpu_custom_call.1} parent=5 // pred_check
        %p1888 = pneg %p1887
      $region58: #{tpu_custom_call.1} parent=5 // pred_check_branch
        %1890 = sbr.rel (%p1888) target = $region60
      $region59: #{tpu_custom_call.1} parent=5 // pred_region
        %s1891 = ssub.s32 %s19, 2
        // Predicated region
        $region61: #{tpu_custom_call.1} parent=59 // pred_check
          %p1892 = pneg %p200
        $region62: #{tpu_custom_call.1} parent=59 // pred_check_branch
          %1894 = sbr.rel (%p1892) target = $region64
        $region63: #{tpu_custom_call.1} parent=59 // pred_region
          %s1895 = sand.u32 %s185, 1
          %s1896 = scalar_lea.sflag [#allocation4], %s1895
          %s1897 = sand.u32 %s185, 1
          %s1898 = smul.addr %s1897, 256
          %s1899 = scalar_lea.vmem [#allocation5], %s1898
          %1901 = dma.done %s1896, 4096
        $region64: #{tpu_custom_call.1} parent=59 // pred_fallthru
          _
      $region60: #{tpu_custom_call.1} parent=5 // pred_fallthru
        _
    $region6: #{tpu_custom_call.1} parent=1 // loop_footer
      %s23 = sadd.s32 1, %s19
    $region7: #{tpu_custom_call.1} parent=1 // loop_footer_branch
      %18 = sbr.rel target = $region3
    $region8: #{tpu_custom_call.1} parent=1 // loop_exit
      _
    %1902 = vsyncpa [#allocation3], 1
    %s1903 = scalar_lea.sflag [#allocation3], 1
    %1904 = vsyncpa %s1903, 1
    %1905 = vsyncpa [#allocation4], 1
    %s1906 = scalar_lea.sflag [#allocation4], 1
    %1907 = vsyncpa %s1906, 1

</llo_original>
